<compile_context>
chip_gen: v6e
topology: v6e:2x2x1
jax: 0.10.0
libtpu: 0.0.40
codegen_flags: <defaults>
</compile_context>

<pallas_src>
import jax
import jax.numpy as jnp
from jax.experimental import pallas as pl
from jax.experimental.pallas import tpu as pltpu

IN_FEATURES = 23
HIDDEN = 128
LANE = 128


def _round_up(v, m):
    return ((v + m - 1) // m) * m


def _linmodel_kernel(x_ref, w1_ref, b1_ref, w2_ref, b2_ref, o_ref):
    # x_ref:  (TN, 23)       tile of node features (f32 in HBM)
    # w1_ref: (23, 128)      full first-layer weight
    # b1_ref: (1, 128)       first-layer bias
    # w2_ref: (128, C_pad)   full second-layer weight, lane-padded
    # b2_ref: (1, C_pad)     second-layer bias, lane-padded
    # o_ref:  (TN, C_pad)    output tile (lane-dense)
    x = x_ref[...].astype(jnp.bfloat16)
    w1 = w1_ref[...].astype(jnp.bfloat16)
    h = jnp.dot(x, w1, preferred_element_type=jnp.float32)
    h = h + b1_ref[...]
    h = jnp.maximum(h, 0.0)                       # ReLU
    # Dropout(p=0.5): identity in eval mode.
    w2 = w2_ref[...].astype(jnp.bfloat16)
    y = jnp.dot(h.astype(jnp.bfloat16), w2, preferred_element_type=jnp.float32)
    y = y + b2_ref[...]
    o_ref[...] = y.astype(o_ref.dtype)


def lin_model_forward(x, edge_index, edge_weight, params, *, tile_n=1024):
    """Fused lin1 -> relu -> (dropout=id) -> linear, tiled over rows of x.

    Rows are padded to a multiple of the tile; output columns are padded to a
    multiple of 128 (lane-dense stores) and sliced back before returning.
    """
    del edge_index, edge_weight  # unused by the PyTorch forward
    w1, b1, w2, b2 = params
    n, f = x.shape
    assert f == IN_FEATURES
    c = w2.shape[1]

    # Shrink the tile for tiny inputs; rows must stay a multiple of 8 (sublane).
    tn = min(tile_n, _round_up(n, 8))
    n_pad = _round_up(n, tn)
    c_pad = _round_up(c, LANE)

    x_p = jnp.pad(x, ((0, n_pad - n), (0, 0))) if n_pad != n else x
    w2_p = jnp.pad(w2, ((0, 0), (0, c_pad - c))) if c_pad != c else w2
    b2_p = jnp.pad(b2, ((0, 0), (0, c_pad - c))) if c_pad != c else b2

    grid = (n_pad // tn,)
    out = pl.pallas_call(
        _linmodel_kernel,
        out_shape=jax.ShapeDtypeStruct((n_pad, c_pad), x.dtype),
        grid_spec=pl.GridSpec(
            grid=grid,
            in_specs=[
                pl.BlockSpec((tn, IN_FEATURES), lambda i: (i, 0)),      # x tile
                pl.BlockSpec((IN_FEATURES, HIDDEN), lambda i: (0, 0)),  # w1 (full)
                pl.BlockSpec((1, HIDDEN), lambda i: (0, 0)),            # b1
                pl.BlockSpec((HIDDEN, c_pad), lambda i: (0, 0)),        # w2 (padded)
                pl.BlockSpec((1, c_pad), lambda i: (0, 0)),             # b2 (padded)
            ],
            out_specs=pl.BlockSpec((tn, c_pad), lambda i: (i, 0)),
        ),
        compiler_params=pltpu.CompilerParams(
            dimension_semantics=("parallel",)),
    )(x_p, w1, b1, w2_p, b2_p)

    return out[:n, :c]


def init_params(key, out_channels):
    """Deterministic init mirroring nn.Linear shapes (uniform +/- 1/sqrt(fan_in))."""
    k1, k2, k3, k4 = jax.random.split(key, 4)
    bound1 = 1.0 / jnp.sqrt(IN_FEATURES)
    bound2 = 1.0 / jnp.sqrt(HIDDEN)
    # stored transposed relative to PyTorch: [in, out]
    w1 = jax.random.uniform(k1, (IN_FEATURES, HIDDEN), jnp.float32, -bound1, bound1)
    b1 = jax.random.uniform(k2, (1, HIDDEN), jnp.float32, -bound1, bound1)
    w2 = jax.random.uniform(k3, (HIDDEN, out_channels), jnp.float32, -bound2, bound2)
    b2 = jax.random.uniform(k4, (1, out_channels), jnp.float32, -bound2, bound2)
    return w1, b1, w2, b2


def reference_forward(x, params):
    w1, b1, w2, b2 = params
    h = jnp.maximum(x @ w1 + b1, 0.0)
    return h @ w2 + b2


if __name__ == "__main__":
    key = jax.random.PRNGKey(0)
    kx, ke, kw, kp = jax.random.split(key, 4)

    N = 2500           # ragged node count (not a multiple of the tile)
    OUT_CHANNELS = 7   # narrow output, exercises lane padding

    x = jax.random.normal(kx, (N, IN_FEATURES), jnp.float32)
    # graph inputs are unused by the forward pass but constructed for fidelity
    edge_index = jax.random.randint(ke, (2, 128), 0, N, jnp.int32)
    edge_weight = jax.random.uniform(kw, (128,), jnp.float32)

    params = init_params(kp, OUT_CHANNELS)

    out = lin_model_forward(x, edge_index, edge_weight, params)
    out = jax.block_until_ready(out)

    ref = reference_forward(x, params)
    assert out.shape == (N, OUT_CHANNELS), out.shape
    # bf16 matmul inputs with f32 accumulation -> loosened tolerance vs f32 ref
    assert jnp.allclose(out, ref, atol=5e-2, rtol=5e-2), "mismatch vs JAX reference"

    print("KERNEL_OK")
</pallas_src>

<mosaic_0001>
module attributes {stable_mosaic.version = 11 : i64} {
  func.func @_linmodel_kernel(%arg0: i32, %arg1: memref<1024x23xf32, #tpu.memory_space<vmem>>, %arg2: memref<23x128xf32, #tpu.memory_space<vmem>>, %arg3: memref<1x128xf32, #tpu.memory_space<vmem>>, %arg4: memref<128x128xf32, #tpu.memory_space<vmem>>, %arg5: memref<1x128xf32, #tpu.memory_space<vmem>>, %arg6: memref<1024x128xf32, #tpu.memory_space<vmem>>) attributes {dimension_semantics = [#tpu.dimension_semantics<parallel>], iteration_bounds = array<i64: 3>, scalar_prefetch = 0 : i64, scratch_operands = 0 : i64, tpu.core_type = #tpu.core_type<tc>, window_params = [{transform_indices = @transform_0, window_bounds = array<i64: 1024, 23>}, {pipeline_mode = #tpu.pipeline_mode<synchronous>, transform_indices = @transform_1, window_bounds = array<i64: 23, 128>}, {pipeline_mode = #tpu.pipeline_mode<synchronous>, transform_indices = @transform_2, window_bounds = array<i64: 1, 128>}, {pipeline_mode = #tpu.pipeline_mode<synchronous>, transform_indices = @transform_3, window_bounds = array<i64: 128, 128>}, {pipeline_mode = #tpu.pipeline_mode<synchronous>, transform_indices = @transform_4, window_bounds = array<i64: 1, 128>}, {transform_indices = @transform_5, window_bounds = array<i64: 1024, 128>}]} {
    %c0 = arith.constant 0 : index
    %c0_0 = arith.constant 0 : index
    %0 = vector.load %arg1[%c0, %c0_0] : memref<1024x23xf32, #tpu.memory_space<vmem>>, vector<1024x23xf32>
    %1 = arith.truncf %0 : vector<1024x23xf32> to vector<1024x23xbf16>
    %c0_1 = arith.constant 0 : index
    %c0_2 = arith.constant 0 : index
    %2 = vector.load %arg2[%c0_1, %c0_2] : memref<23x128xf32, #tpu.memory_space<vmem>>, vector<23x128xf32>
    %3 = arith.truncf %2 : vector<23x128xf32> to vector<23x128xbf16>
    %cst = arith.constant dense<0.000000e+00> : vector<1024x128xf32>
    %4 = tpu.matmul %1, %3, %cst {dimension_numbers = #tpu.dot_dimension_numbers<[1], [0], [0], [1], [0, 0, 1, 1], [], []>} : vector<1024x23xbf16>, vector<23x128xbf16>, vector<1024x128xf32> -> vector<1024x128xf32>
    %c0_3 = arith.constant 0 : index
    %c0_4 = arith.constant 0 : index
    %5 = vector.load %arg3[%c0_3, %c0_4] : memref<1x128xf32, #tpu.memory_space<vmem>>, vector<1x128xf32>
    %6 = vector.broadcast %5 : vector<1x128xf32> to vector<1024x128xf32>
    %7 = arith.addf %4, %6 : vector<1024x128xf32>
    %cst_5 = arith.constant 0.000000e+00 : f32
    %8 = vector.broadcast %cst_5 : f32 to vector<1024x128xf32>
    %9 = arith.maximumf %7, %8 : vector<1024x128xf32>
    %c0_6 = arith.constant 0 : index
    %c0_7 = arith.constant 0 : index
    %10 = vector.load %arg4[%c0_6, %c0_7] : memref<128x128xf32, #tpu.memory_space<vmem>>, vector<128x128xf32>
    %11 = arith.truncf %10 : vector<128x128xf32> to vector<128x128xbf16>
    %12 = arith.truncf %9 : vector<1024x128xf32> to vector<1024x128xbf16>
    %cst_8 = arith.constant dense<0.000000e+00> : vector<1024x128xf32>
    %13 = tpu.matmul %12, %11, %cst_8 {dimension_numbers = #tpu.dot_dimension_numbers<[1], [0], [0], [1], [0, 0, 1, 1], [], []>} : vector<1024x128xbf16>, vector<128x128xbf16>, vector<1024x128xf32> -> vector<1024x128xf32>
    %c0_9 = arith.constant 0 : index
    %c0_10 = arith.constant 0 : index
    %14 = vector.load %arg5[%c0_9, %c0_10] : memref<1x128xf32, #tpu.memory_space<vmem>>, vector<1x128xf32>
    %15 = vector.broadcast %14 : vector<1x128xf32> to vector<1024x128xf32>
    %16 = arith.addf %13, %15 : vector<1024x128xf32>
    %c0_11 = arith.constant 0 : index
    %c0_12 = arith.constant 0 : index
    %17 = vector.load %arg6[%c0_11, %c0_12] : memref<1024x128xf32, #tpu.memory_space<vmem>>, vector<1024x128xf32>
    tpu.vector_store %arg6[%c0_11, %c0_12], %16 {strides = array<i32>} : memref<1024x128xf32, #tpu.memory_space<vmem>>, vector<1024x128xf32>,
    return
  }
  func.func @transform_0(%arg0: i32) -> (i32, i32) {
    %c0_i32 = arith.constant 0 : i32
    %c0_i32_0 = arith.constant 0 : i32
    return %arg0, %c0_i32 : i32, i32
  }
  func.func @transform_1(%arg0: i32) -> (i32, i32) {
    %c0_i32 = arith.constant 0 : i32
    %c0_i32_0 = arith.constant 0 : i32
    %c0_i32_1 = arith.constant 0 : i32
    return %c0_i32, %c0_i32_0 : i32, i32
  }
  func.func @transform_2(%arg0: i32) -> (i32, i32) {
    %c0_i32 = arith.constant 0 : i32
    %c0_i32_0 = arith.constant 0 : i32
    %c0_i32_1 = arith.constant 0 : i32
    return %c0_i32, %c0_i32_0 : i32, i32
  }
  func.func @transform_3(%arg0: i32) -> (i32, i32) {
    %c0_i32 = arith.constant 0 : i32
    %c0_i32_0 = arith.constant 0 : i32
    %c0_i32_1 = arith.constant 0 : i32
    return %c0_i32, %c0_i32_0 : i32, i32
  }
  func.func @transform_4(%arg0: i32) -> (i32, i32) {
    %c0_i32 = arith.constant 0 : i32
    %c0_i32_0 = arith.constant 0 : i32
    %c0_i32_1 = arith.constant 0 : i32
    return %c0_i32, %c0_i32_0 : i32, i32
  }
  func.func @transform_5(%arg0: i32) -> (i32, i32) {
    %c0_i32 = arith.constant 0 : i32
    %c0_i32_0 = arith.constant 0 : i32
    return %arg0, %c0_i32 : i32, i32
  }
}

</mosaic_0001>

<llo_original>
// kernel: tpu_custom_call.1
$region0: #{tpu_custom_call.1}
  #allocation0 [shape = 'u32[]', space=smem, size = 0x4, offset = 0x4, fixed_abs, tag = 'smem constant byte address 0x4 - core index']
  #allocation1 [shape = 'u32[144,128]{1,0:T(1,128)}', space=vmem, size = 0x12000, scoped, tag = 'internal scratch']
  %s0 = inlined_call_operand.vmem [shape: f32[3072,23], index: 0, kind: input, shape index: {}]
  %s1 = inlined_call_operand.vmem [shape: f32[23,128], index: 1, kind: input, shape index: {}]
  %s2 = inlined_call_operand.vmem [shape: f32[1,128], index: 2, kind: input, shape index: {}]
  %s3 = inlined_call_operand.vmem [shape: f32[128,128], index: 3, kind: input, shape index: {}]
  %s4 = inlined_call_operand.vmem [shape: f32[1,128], index: 4, kind: input, shape index: {}]
  %s5 = inlined_call_operand.hbm [shape: f32[3072,128], index: 5, kind: output, shape index: {}]
  %s6 = sld [smem:[#allocation0]]
  $region53: #{tpu_custom_call.1} parent=0
    _
  %s8 = ssub.s32 1, %s6
  %s9 = scalar_select 0, %s8, %s6
  $region1: #{tpu_custom_call.1} parent=0
    #allocation2 [shape = 'u8[1048576]{0}', space=vmem, size = 0x100000, scoped, tag = 'output window, operand 0']
    #allocation3 [shape = 's32[2]{0}', space=sflag, size = 0x8, scoped, tag = 'scoped memory for tpu_custom_call.1']
    %10 = vsyncpa [#allocation3], 0
    %s11 = scalar_lea.sflag [#allocation3], 1
    %12 = vsyncpa %s11, 0
    loop: start=0, step=1, limit=5
    $region2: #{tpu_custom_call.1} parent=1 // loop_pre_header
      _
    $region3: #{tpu_custom_call.1} parent=1 // loop_header
      %s14 = sphi 0, %s18
      %p15 = scmp.ge.s32.totalorder %s14, 5
      %s24 = sphi 0, %s26
      %s27 = sphi 0, %s24
      %s28 = sphi 0, %s27
      %s44 = sphi 0, %s28
      %s48 = sphi 0, %s48
      %s50 = sphi 0, %s48
      %s51 = sphi 0, %s50
      %s65 = sphi 0, %s51
      %s69 = sphi 0, %s69
      %s71 = sphi 0, %s69
      %s72 = sphi 0, %s71
      %s86 = sphi 0, %s72
      %s90 = sphi 0, %s90
      %s92 = sphi 0, %s90
      %s93 = sphi 0, %s92
      %s107 = sphi 0, %s93
      %s111 = sphi 0, %s111
      %s113 = sphi 0, %s111
      %s114 = sphi 0, %s113
      %s128 = sphi 0, %s114
      %s134 = sphi 0, %s136
      %s137 = sphi 0, %s134
      %s138 = sphi 0, %s137
      %s154 = sphi 0, %s138
    $region4: #{tpu_custom_call.1} parent=1 // loop_header_branch
      %17 = sbr.rel (%p15) target = $region8
    $region5: #{tpu_custom_call.1} parent=1 // loop_body
      %s19 = ssub.s32 %s14, 1
      %s20 = ssub.s32 %s14, 2
      %s21 = sadd.s32 %s14, 1
      %s22 = ssub.s32 %s14, %s21
      %p23 = scmp.eq.s32.totalorder %s22, 0
      %s25 = sadd.s32 %s24, 1
      %s26 = scalar_select %p23, %s24, %s25
      %p29 = pneg %p23
      %p30 = scmp.eq.s32.totalorder %s14, 2
      %p31 = por %p29, %p30
      %p32 = scmp.ne.s32.totalorder %s24, %s27
      %p33 = scmp.eq.s32.totalorder %s14, 0
      %p34 = por %p32, %p33
      %p35 = scmp.ne.s32.totalorder %s24, %s27
      %p36 = scmp.eq.s32.totalorder %s19, 2
      %p37 = por %p35, %p36
      %p38 = scmp.ne.s32.totalorder %s27, %s28
      %p39 = scmp.eq.s32.totalorder %s19, 0
      %p40 = por %p38, %p39
      %p41 = scmp.ne.s32.totalorder %s27, %s28
      %p42 = scmp.eq.s32.totalorder %s20, 2
      %p43 = por %p41, %p42
      %p45 = scmp.ne.s32.totalorder %s28, %s44
      %p46 = scmp.eq.s32.totalorder %s20, 0
      %p47 = por %p45, %p46
      %s49 = sadd.s32 %s48, 1
      %p52 = scmp.eq.s32.totalorder %s14, 2
      %p53 = scmp.ne.s32.totalorder %s48, %s50
      %p54 = scmp.eq.s32.totalorder %s14, 0
      %p55 = por %p53, %p54
      %p56 = scmp.ne.s32.totalorder %s48, %s50
      %p57 = scmp.eq.s32.totalorder %s19, 2
      %p58 = por %p56, %p57
      %p59 = scmp.ne.s32.totalorder %s50, %s51
      %p60 = scmp.eq.s32.totalorder %s19, 0
      %p61 = por %p59, %p60
      %p62 = scmp.ne.s32.totalorder %s50, %s51
      %p63 = scmp.eq.s32.totalorder %s20, 2
      %p64 = por %p62, %p63
      %p66 = scmp.ne.s32.totalorder %s51, %s65
      %p67 = scmp.eq.s32.totalorder %s20, 0
      %p68 = por %p66, %p67
      %s70 = sadd.s32 %s69, 1
      %p73 = scmp.eq.s32.totalorder %s14, 2
      %p74 = scmp.ne.s32.totalorder %s69, %s71
      %p75 = scmp.eq.s32.totalorder %s14, 0
      %p76 = por %p74, %p75
      %p77 = scmp.ne.s32.totalorder %s69, %s71
      %p78 = scmp.eq.s32.totalorder %s19, 2
      %p79 = por %p77, %p78
      %p80 = scmp.ne.s32.totalorder %s71, %s72
      %p81 = scmp.eq.s32.totalorder %s19, 0
      %p82 = por %p80, %p81
      %p83 = scmp.ne.s32.totalorder %s71, %s72
      %p84 = scmp.eq.s32.totalorder %s20, 2
      %p85 = por %p83, %p84
      %p87 = scmp.ne.s32.totalorder %s72, %s86
      %p88 = scmp.eq.s32.totalorder %s20, 0
      %p89 = por %p87, %p88
      %s91 = sadd.s32 %s90, 1
      %p94 = scmp.eq.s32.totalorder %s14, 2
      %p95 = scmp.ne.s32.totalorder %s90, %s92
      %p96 = scmp.eq.s32.totalorder %s14, 0
      %p97 = por %p95, %p96
      %p98 = scmp.ne.s32.totalorder %s90, %s92
      %p99 = scmp.eq.s32.totalorder %s19, 2
      %p100 = por %p98, %p99
      %p101 = scmp.ne.s32.totalorder %s92, %s93
      %p102 = scmp.eq.s32.totalorder %s19, 0
      %p103 = por %p101, %p102
      %p104 = scmp.ne.s32.totalorder %s92, %s93
      %p105 = scmp.eq.s32.totalorder %s20, 2
      %p106 = por %p104, %p105
      %p108 = scmp.ne.s32.totalorder %s93, %s107
      %p109 = scmp.eq.s32.totalorder %s20, 0
      %p110 = por %p108, %p109
      %s112 = sadd.s32 %s111, 1
      %p115 = scmp.eq.s32.totalorder %s14, 2
      %p116 = scmp.ne.s32.totalorder %s111, %s113
      %p117 = scmp.eq.s32.totalorder %s14, 0
      %p118 = por %p116, %p117
      %p119 = scmp.ne.s32.totalorder %s111, %s113
      %p120 = scmp.eq.s32.totalorder %s19, 2
      %p121 = por %p119, %p120
      %p122 = scmp.ne.s32.totalorder %s113, %s114
      %p123 = scmp.eq.s32.totalorder %s19, 0
      %p124 = por %p122, %p123
      %p125 = scmp.ne.s32.totalorder %s113, %s114
      %p126 = scmp.eq.s32.totalorder %s20, 2
      %p127 = por %p125, %p126
      %p129 = scmp.ne.s32.totalorder %s114, %s128
      %p130 = scmp.eq.s32.totalorder %s20, 0
      %p131 = por %p129, %p130
      %s132 = ssub.s32 %s14, %s21
      %p133 = scmp.eq.s32.totalorder %s132, 0
      %s135 = sadd.s32 %s134, 1
      %s136 = scalar_select %p133, %s134, %s135
      %p139 = pneg %p133
      %p140 = scmp.eq.s32.totalorder %s14, 2
      %p141 = por %p139, %p140
      %p142 = scmp.ne.s32.totalorder %s134, %s137
      %p143 = scmp.eq.s32.totalorder %s14, 0
      %p144 = por %p142, %p143
      %p145 = scmp.ne.s32.totalorder %s134, %s137
      %p146 = scmp.eq.s32.totalorder %s19, 2
      %p147 = por %p145, %p146
      %p148 = scmp.ne.s32.totalorder %s137, %s138
      %p149 = scmp.eq.s32.totalorder %s19, 0
      %p150 = por %p148, %p149
      %p151 = scmp.ne.s32.totalorder %s137, %s138
      %p152 = scmp.eq.s32.totalorder %s20, 2
      %p153 = por %p151, %p152
      %p155 = scmp.ne.s32.totalorder %s138, %s154
      %p156 = scmp.eq.s32.totalorder %s20, 0
      %p157 = por %p155, %p156
      %p158 = scmp.le.s32.totalorder 1, %s14
      %p159 = scmp.lt.s32.totalorder %s14, 4
      %p160 = pnand %p158, %p159
      %p161 = pneg %p160
      // Predicated region
      $region9: #{tpu_custom_call.1} parent=5 // pred_check
        _
      $region10: #{tpu_custom_call.1} parent=5 // pred_check_branch
        %163 = sbr.rel (%p160) target = $region12
      $region11: #{tpu_custom_call.1} parent=5 // pred_region
        %s164 = ssub.s32 %s14, 1
        // Predicated region
        $region13: #{tpu_custom_call.1} parent=11 // pred_check
          %p165 = pneg %p61
        $region14: #{tpu_custom_call.1} parent=11 // pred_check_branch
          %167 = sbr.rel (%p165) target = $region16
        $region15: #{tpu_custom_call.1} parent=11 // pred_region
          _
        $region16: #{tpu_custom_call.1} parent=11 // pred_fallthru
          _
        // Predicated region
        $region17: #{tpu_custom_call.1} parent=11 // pred_check
          %p168 = pneg %p82
        $region18: #{tpu_custom_call.1} parent=11 // pred_check_branch
          %170 = sbr.rel (%p168) target = $region20
        $region19: #{tpu_custom_call.1} parent=11 // pred_region
          _
        $region20: #{tpu_custom_call.1} parent=11 // pred_fallthru
          _
        // Predicated region
        $region21: #{tpu_custom_call.1} parent=11 // pred_check
          %p171 = pneg %p103
        $region22: #{tpu_custom_call.1} parent=11 // pred_check_branch
          %173 = sbr.rel (%p171) target = $region24
        $region23: #{tpu_custom_call.1} parent=11 // pred_region
          _
        $region24: #{tpu_custom_call.1} parent=11 // pred_fallthru
          _
        // Predicated region
        $region25: #{tpu_custom_call.1} parent=11 // pred_check
          %p174 = pneg %p124
        $region26: #{tpu_custom_call.1} parent=11 // pred_check_branch
          %176 = sbr.rel (%p174) target = $region28
        $region27: #{tpu_custom_call.1} parent=11 // pred_region
          _
        $region28: #{tpu_custom_call.1} parent=11 // pred_fallthru
          _
      $region12: #{tpu_custom_call.1} parent=5 // pred_fallthru
        _
      %p177 = scmp.lt.s32.totalorder %s14, 3
      // Predicated region
      $region29: #{tpu_custom_call.1} parent=5 // pred_check
        %p178 = pneg %p177
      $region30: #{tpu_custom_call.1} parent=5 // pred_check_branch
        %180 = sbr.rel (%p178) target = $region32
      $region31: #{tpu_custom_call.1} parent=5 // pred_region
        // Predicated region
        $region33: #{tpu_custom_call.1} parent=31 // pred_check
          %p181 = pneg %p34
        $region34: #{tpu_custom_call.1} parent=31 // pred_check_branch
          %183 = sbr.rel (%p181) target = $region36
        $region35: #{tpu_custom_call.1} parent=31 // pred_region
          %s184 = smul.u32 128, %s14
          %p185 = scmp.lt.s32.totalorder %s184, 383
          %s186 = scalar_select %p185, %s184, 383
          %s187 = smul.addr %s186, 8
          %s188 = scalar_lea.vmem %s0, %s187
          %s189 = smul.u32 128, %s14
        $region36: #{tpu_custom_call.1} parent=31 // pred_fallthru
          _
      $region32: #{tpu_custom_call.1} parent=5 // pred_fallthru
        _
      %p190 = scmp.le.s32.totalorder 1, %s14
      %p191 = scmp.lt.s32.totalorder %s14, 4
      %p192 = pnand %p190, %p191
      %p193 = pneg %p192
      // Predicated region
      $region37: #{tpu_custom_call.1} parent=5 // pred_check
        _
      $region38: #{tpu_custom_call.1} parent=5 // pred_check_branch
        %195 = sbr.rel (%p192) target = $region40
      $region39: #{tpu_custom_call.1} parent=5 // pred_region
        %s196 = ssub.s32 %s14, 1
        %s197 = smul.u32 128, %s19
        %p198 = scmp.lt.s32.totalorder %s197, 383
        %s199 = scalar_select %p198, %s197, 383
        %s200 = smul.addr %s199, 8
        %s201 = scalar_lea.vmem %s0, %s200
        %p202 = pneg %p40
        %p203 = pneg %p37
        %p204 = pneg %p61
        %p205 = pneg %p58
        %p206 = pneg %p82
        %p207 = pneg %p79
        %p208 = pneg %p103
        %p209 = pneg %p100
        %p210 = pneg %p124
        %p211 = pneg %p121
        %p212 = pneg %p150
        %p213 = pneg %p147
        %s214 = sand.u32 %s137, 1
        %s215 = scalar_lea.sflag [#allocation3], %s214
        %s216 = sand.u32 %s137, 1
        %s217 = smul.addr %s216, 1024
        %s218 = scalar_lea.vmem [#allocation2], %s217
        %s219 = smul.u32 128, %s19
        %p220 = scmp.lt.s32.totalorder %s219, 383
        %s221 = scalar_select %p220, %s219, 383
        %s222 = smul.addr %s221, 8
        %s223 = scalar_lea.vmem %s0, %s222
        %s224 = smul.u32 128, %s19
        %s225 = smul.u32 128, %s19
        %v227 = vld [vmem:[%s223] sm:$0xff]
        %v228 = vld [vmem:[%s223 + $0x8] sm:$0xff]
        %v229 = vld [vmem:[%s223 + $0x10] sm:$0xff]
        %v230 = vld [vmem:[%s223 + $0x18] sm:$0xff]
        %v231 = vld [vmem:[%s223 + $0x20] sm:$0xff]
        %v232 = vld [vmem:[%s223 + $0x28] sm:$0xff]
        %v233 = vld [vmem:[%s223 + $0x30] sm:$0xff]
        %v234 = vld [vmem:[%s223 + $0x38] sm:$0xff]
        %v235 = vld [vmem:[%s223 + $0x40] sm:$0xff]
        %v236 = vld [vmem:[%s223 + $0x48] sm:$0xff]
        %v237 = vld [vmem:[%s223 + $0x50] sm:$0xff]
        %v238 = vld [vmem:[%s223 + $0x58] sm:$0xff]
        %v239 = vld [vmem:[%s223 + $0x60] sm:$0xff]
        %v240 = vld [vmem:[%s223 + $0x68] sm:$0xff]
        %v241 = vld [vmem:[%s223 + $0x70] sm:$0xff]
        %v242 = vld [vmem:[%s223 + $0x78] sm:$0xff]
        %v243 = vld [vmem:[%s223 + $0x80] sm:$0xff]
        %v244 = vld [vmem:[%s223 + $0x88] sm:$0xff]
        %v245 = vld [vmem:[%s223 + $0x90] sm:$0xff]
        %v246 = vld [vmem:[%s223 + $0x98] sm:$0xff]
        %v247 = vld [vmem:[%s223 + $0xa0] sm:$0xff]
        %v248 = vld [vmem:[%s223 + $0xa8] sm:$0xff]
        %v249 = vld [vmem:[%s223 + $0xb0] sm:$0xff]
        %v250 = vld [vmem:[%s223 + $0xb8] sm:$0xff]
        %v251 = vld [vmem:[%s223 + $0xc0] sm:$0xff]
        %v252 = vld [vmem:[%s223 + $0xc8] sm:$0xff]
        %v253 = vld [vmem:[%s223 + $0xd0] sm:$0xff]
        %v254 = vld [vmem:[%s223 + $0xd8] sm:$0xff]
        %v255 = vld [vmem:[%s223 + $0xe0] sm:$0xff]
        %v256 = vld [vmem:[%s223 + $0xe8] sm:$0xff]
        %v257 = vld [vmem:[%s223 + $0xf0] sm:$0xff]
        %v258 = vld [vmem:[%s223 + $0xf8] sm:$0xff]
        %v259 = vld [vmem:[%s223 + $0x100] sm:$0xff]
        %v260 = vld [vmem:[%s223 + $0x108] sm:$0xff]
        %v261 = vld [vmem:[%s223 + $0x110] sm:$0xff]
        %v262 = vld [vmem:[%s223 + $0x118] sm:$0xff]
        %v263 = vld [vmem:[%s223 + $0x120] sm:$0xff]
        %v264 = vld [vmem:[%s223 + $0x128] sm:$0xff]
        %v265 = vld [vmem:[%s223 + $0x130] sm:$0xff]
        %v266 = vld [vmem:[%s223 + $0x138] sm:$0xff]
        %v267 = vld [vmem:[%s223 + $0x140] sm:$0xff]
        %v268 = vld [vmem:[%s223 + $0x148] sm:$0xff]
        %v269 = vld [vmem:[%s223 + $0x150] sm:$0xff]
        %v270 = vld [vmem:[%s223 + $0x158] sm:$0xff]
        %v271 = vld [vmem:[%s223 + $0x160] sm:$0xff]
        %v272 = vld [vmem:[%s223 + $0x168] sm:$0xff]
        %v273 = vld [vmem:[%s223 + $0x170] sm:$0xff]
        %v274 = vld [vmem:[%s223 + $0x178] sm:$0xff]
        %v275 = vld [vmem:[%s223 + $0x180] sm:$0xff]
        %v276 = vld [vmem:[%s223 + $0x188] sm:$0xff]
        %v277 = vld [vmem:[%s223 + $0x190] sm:$0xff]
        %v278 = vld [vmem:[%s223 + $0x198] sm:$0xff]
        %v279 = vld [vmem:[%s223 + $0x1a0] sm:$0xff]
        %v280 = vld [vmem:[%s223 + $0x1a8] sm:$0xff]
        %v281 = vld [vmem:[%s223 + $0x1b0] sm:$0xff]
        %v282 = vld [vmem:[%s223 + $0x1b8] sm:$0xff]
        %v283 = vld [vmem:[%s223 + $0x1c0] sm:$0xff]
        %v284 = vld [vmem:[%s223 + $0x1c8] sm:$0xff]
        %v285 = vld [vmem:[%s223 + $0x1d0] sm:$0xff]
        %v286 = vld [vmem:[%s223 + $0x1d8] sm:$0xff]
        %v287 = vld [vmem:[%s223 + $0x1e0] sm:$0xff]
        %v288 = vld [vmem:[%s223 + $0x1e8] sm:$0xff]
        %v289 = vld [vmem:[%s223 + $0x1f0] sm:$0xff]
        %v290 = vld [vmem:[%s223 + $0x1f8] sm:$0xff]
        %v291 = vld [vmem:[%s223 + $0x200] sm:$0xff]
        %v292 = vld [vmem:[%s223 + $0x208] sm:$0xff]
        %v293 = vld [vmem:[%s223 + $0x210] sm:$0xff]
        %v294 = vld [vmem:[%s223 + $0x218] sm:$0xff]
        %v295 = vld [vmem:[%s223 + $0x220] sm:$0xff]
        %v296 = vld [vmem:[%s223 + $0x228] sm:$0xff]
        %v297 = vld [vmem:[%s223 + $0x230] sm:$0xff]
        %v298 = vld [vmem:[%s223 + $0x238] sm:$0xff]
        %v299 = vld [vmem:[%s223 + $0x240] sm:$0xff]
        %v300 = vld [vmem:[%s223 + $0x248] sm:$0xff]
        %v301 = vld [vmem:[%s223 + $0x250] sm:$0xff]
        %v302 = vld [vmem:[%s223 + $0x258] sm:$0xff]
        %v303 = vld [vmem:[%s223 + $0x260] sm:$0xff]
        %v304 = vld [vmem:[%s223 + $0x268] sm:$0xff]
        %v305 = vld [vmem:[%s223 + $0x270] sm:$0xff]
        %v306 = vld [vmem:[%s223 + $0x278] sm:$0xff]
        %v307 = vld [vmem:[%s223 + $0x280] sm:$0xff]
        %v308 = vld [vmem:[%s223 + $0x288] sm:$0xff]
        %v309 = vld [vmem:[%s223 + $0x290] sm:$0xff]
        %v310 = vld [vmem:[%s223 + $0x298] sm:$0xff]
        %v311 = vld [vmem:[%s223 + $0x2a0] sm:$0xff]
        %v312 = vld [vmem:[%s223 + $0x2a8] sm:$0xff]
        %v313 = vld [vmem:[%s223 + $0x2b0] sm:$0xff]
        %v314 = vld [vmem:[%s223 + $0x2b8] sm:$0xff]
        %v315 = vld [vmem:[%s223 + $0x2c0] sm:$0xff]
        %v316 = vld [vmem:[%s223 + $0x2c8] sm:$0xff]
        %v317 = vld [vmem:[%s223 + $0x2d0] sm:$0xff]
        %v318 = vld [vmem:[%s223 + $0x2d8] sm:$0xff]
        %v319 = vld [vmem:[%s223 + $0x2e0] sm:$0xff]
        %v320 = vld [vmem:[%s223 + $0x2e8] sm:$0xff]
        %v321 = vld [vmem:[%s223 + $0x2f0] sm:$0xff]
        %v322 = vld [vmem:[%s223 + $0x2f8] sm:$0xff]
        %v323 = vld [vmem:[%s223 + $0x300] sm:$0xff]
        %v324 = vld [vmem:[%s223 + $0x308] sm:$0xff]
        %v325 = vld [vmem:[%s223 + $0x310] sm:$0xff]
        %v326 = vld [vmem:[%s223 + $0x318] sm:$0xff]
        %v327 = vld [vmem:[%s223 + $0x320] sm:$0xff]
        %v328 = vld [vmem:[%s223 + $0x328] sm:$0xff]
        %v329 = vld [vmem:[%s223 + $0x330] sm:$0xff]
        %v330 = vld [vmem:[%s223 + $0x338] sm:$0xff]
        %v331 = vld [vmem:[%s223 + $0x340] sm:$0xff]
        %v332 = vld [vmem:[%s223 + $0x348] sm:$0xff]
        %v333 = vld [vmem:[%s223 + $0x350] sm:$0xff]
        %v334 = vld [vmem:[%s223 + $0x358] sm:$0xff]
        %v335 = vld [vmem:[%s223 + $0x360] sm:$0xff]
        %v336 = vld [vmem:[%s223 + $0x368] sm:$0xff]
        %v337 = vld [vmem:[%s223 + $0x370] sm:$0xff]
        %v338 = vld [vmem:[%s223 + $0x378] sm:$0xff]
        %v339 = vld [vmem:[%s223 + $0x380] sm:$0xff]
        %v340 = vld [vmem:[%s223 + $0x388] sm:$0xff]
        %v341 = vld [vmem:[%s223 + $0x390] sm:$0xff]
        %v342 = vld [vmem:[%s223 + $0x398] sm:$0xff]
        %v343 = vld [vmem:[%s223 + $0x3a0] sm:$0xff]
        %v344 = vld [vmem:[%s223 + $0x3a8] sm:$0xff]
        %v345 = vld [vmem:[%s223 + $0x3b0] sm:$0xff]
        %v346 = vld [vmem:[%s223 + $0x3b8] sm:$0xff]
        %v347 = vld [vmem:[%s223 + $0x3c0] sm:$0xff]
        %v348 = vld [vmem:[%s223 + $0x3c8] sm:$0xff]
        %v349 = vld [vmem:[%s223 + $0x3d0] sm:$0xff]
        %v350 = vld [vmem:[%s223 + $0x3d8] sm:$0xff]
        %v351 = vld [vmem:[%s223 + $0x3e0] sm:$0xff]
        %v352 = vld [vmem:[%s223 + $0x3e8] sm:$0xff]
        %v353 = vld [vmem:[%s223 + $0x3f0] sm:$0xff]
        %v354 = vld [vmem:[%s223 + $0x3f8] sm:$0xff]
        %v355 = vpack.c.bf16 %v228, %v227
        %v356 = vpack.c.bf16 %v230, %v229
        %v357 = vpack.c.bf16 %v232, %v231
        %v358 = vpack.c.bf16 %v234, %v233
        %v359 = vpack.c.bf16 %v236, %v235
        %v360 = vpack.c.bf16 %v238, %v237
        %v361 = vpack.c.bf16 %v240, %v239
        %v362 = vpack.c.bf16 %v242, %v241
        %v363 = vpack.c.bf16 %v244, %v243
        %v364 = vpack.c.bf16 %v246, %v245
        %v365 = vpack.c.bf16 %v248, %v247
        %v366 = vpack.c.bf16 %v250, %v249
        %v367 = vpack.c.bf16 %v252, %v251
        %v368 = vpack.c.bf16 %v254, %v253
        %v369 = vpack.c.bf16 %v256, %v255
        %v370 = vpack.c.bf16 %v258, %v257
        %v371 = vpack.c.bf16 %v260, %v259
        %v372 = vpack.c.bf16 %v262, %v261
        %v373 = vpack.c.bf16 %v264, %v263
        %v374 = vpack.c.bf16 %v266, %v265
        %v375 = vpack.c.bf16 %v268, %v267
        %v376 = vpack.c.bf16 %v270, %v269
        %v377 = vpack.c.bf16 %v272, %v271
        %v378 = vpack.c.bf16 %v274, %v273
        %v379 = vpack.c.bf16 %v276, %v275
        %v380 = vpack.c.bf16 %v278, %v277
        %v381 = vpack.c.bf16 %v280, %v279
        %v382 = vpack.c.bf16 %v282, %v281
        %v383 = vpack.c.bf16 %v284, %v283
        %v384 = vpack.c.bf16 %v286, %v285
        %v385 = vpack.c.bf16 %v288, %v287
        %v386 = vpack.c.bf16 %v290, %v289
        %v387 = vpack.c.bf16 %v292, %v291
        %v388 = vpack.c.bf16 %v294, %v293
        %v389 = vpack.c.bf16 %v296, %v295
        %v390 = vpack.c.bf16 %v298, %v297
        %v391 = vpack.c.bf16 %v300, %v299
        %v392 = vpack.c.bf16 %v302, %v301
        %v393 = vpack.c.bf16 %v304, %v303
        %v394 = vpack.c.bf16 %v306, %v305
        %v395 = vpack.c.bf16 %v308, %v307
        %v396 = vpack.c.bf16 %v310, %v309
        %v397 = vpack.c.bf16 %v312, %v311
        %v398 = vpack.c.bf16 %v314, %v313
        %v399 = vpack.c.bf16 %v316, %v315
        %v400 = vpack.c.bf16 %v318, %v317
        %v401 = vpack.c.bf16 %v320, %v319
        %v402 = vpack.c.bf16 %v322, %v321
        %v403 = vpack.c.bf16 %v324, %v323
        %v404 = vpack.c.bf16 %v326, %v325
        %v405 = vpack.c.bf16 %v328, %v327
        %v406 = vpack.c.bf16 %v330, %v329
        %v407 = vpack.c.bf16 %v332, %v331
        %v408 = vpack.c.bf16 %v334, %v333
        %v409 = vpack.c.bf16 %v336, %v335
        %v410 = vpack.c.bf16 %v338, %v337
        %v411 = vpack.c.bf16 %v340, %v339
        %v412 = vpack.c.bf16 %v342, %v341
        %v413 = vpack.c.bf16 %v344, %v343
        %v414 = vpack.c.bf16 %v346, %v345
        %v415 = vpack.c.bf16 %v348, %v347
        %v416 = vpack.c.bf16 %v350, %v349
        %v417 = vpack.c.bf16 %v352, %v351
        %v418 = vpack.c.bf16 %v354, %v353
        %v419 = vld [vmem:[%s1] sm:$0xff]
        %v420 = vld [vmem:[%s1 + $0x8] sm:$0xff]
        %v421 = vld [vmem:[%s1 + $0x10] sm:$0x7f]
        %v422 = vpack.c.bf16 %v420, %v419
        %v423 = vpack.c.bf16 %v421, %v421
        %v424 = vld [vmem:[%s2] sm:$0x1]
        %v426 = vlaneseq
        %v427 = vshrl.u32 %v426, 7
        %v428 = vsub.s32 0, %v427
        %v429 = vrot.slane %v424, %v428
        %vm431 = vcmask 187392
        %v433 = vsel %vm431, %v355, 0
        %v436 = vsel %vm431, %v356, 0
        %v439 = vsel %vm431, %v357, 0
        %v442 = vsel %vm431, %v358, 0
        %v445 = vsel %vm431, %v359, 0
        %v448 = vsel %vm431, %v360, 0
        %v451 = vsel %vm431, %v361, 0
        %v454 = vsel %vm431, %v362, 0
        %v457 = vsel %vm431, %v363, 0
        %v460 = vsel %vm431, %v364, 0
        %v463 = vsel %vm431, %v365, 0
        %v466 = vsel %vm431, %v366, 0
        %v469 = vsel %vm431, %v367, 0
        %v472 = vsel %vm431, %v368, 0
        %v475 = vsel %vm431, %v369, 0
        %v478 = vsel %vm431, %v370, 0
        %v481 = vsel %vm431, %v371, 0
        %v484 = vsel %vm431, %v372, 0
        %v487 = vsel %vm431, %v373, 0
        %v490 = vsel %vm431, %v374, 0
        %v493 = vsel %vm431, %v375, 0
        %v496 = vsel %vm431, %v376, 0
        %v499 = vsel %vm431, %v377, 0
        %v502 = vsel %vm431, %v378, 0
        %v505 = vsel %vm431, %v379, 0
        %v508 = vsel %vm431, %v380, 0
        %v511 = vsel %vm431, %v381, 0
        %v514 = vsel %vm431, %v382, 0
        %v517 = vsel %vm431, %v383, 0
        %v520 = vsel %vm431, %v384, 0
        %v523 = vsel %vm431, %v385, 0
        %v526 = vsel %vm431, %v386, 0
        %v529 = vsel %vm431, %v387, 0
        %v532 = vsel %vm431, %v388, 0
        %v535 = vsel %vm431, %v389, 0
        %v538 = vsel %vm431, %v390, 0
        %v541 = vsel %vm431, %v391, 0
        %v544 = vsel %vm431, %v392, 0
        %v547 = vsel %vm431, %v393, 0
        %v550 = vsel %vm431, %v394, 0
        %v553 = vsel %vm431, %v395, 0
        %v556 = vsel %vm431, %v396, 0
        %v559 = vsel %vm431, %v397, 0
        %v562 = vsel %vm431, %v398, 0
        %v565 = vsel %vm431, %v399, 0
        %v568 = vsel %vm431, %v400, 0
        %v571 = vsel %vm431, %v401, 0
        %v574 = vsel %vm431, %v402, 0
        %v577 = vsel %vm431, %v403, 0
        %v580 = vsel %vm431, %v404, 0
        %v583 = vsel %vm431, %v405, 0
        %v586 = vsel %vm431, %v406, 0
        %v589 = vsel %vm431, %v407, 0
        %v592 = vsel %vm431, %v408, 0
        %v595 = vsel %vm431, %v409, 0
        %v598 = vsel %vm431, %v410, 0
        %v601 = vsel %vm431, %v411, 0
        %v604 = vsel %vm431, %v412, 0
        %v607 = vsel %vm431, %v413, 0
        %v610 = vsel %vm431, %v414, 0
        %v613 = vsel %vm431, %v415, 0
        %v616 = vsel %vm431, %v416, 0
        %v619 = vsel %vm431, %v417, 0
        %v622 = vsel %vm431, %v418, 0
        %vm624 = vcmask 1042432
        %vm625 = vcmask 1043456
        %v626 = vsel %vm624, 4294967295, 65535
        %v627 = vsel %vm625, %v626, 0
        %v629 = vand.u32 %v423, %v627
        %631 = vmatprep.subr.bf16.mxu0 0
        %632 = vmatpush1.bf16.msra.mxu0 0
        %633 = vmatprep.subr.bf16.mxu0 0
        %634 = vmatpush1.bf16.msra.mxu0 0
        %635 = vmatprep.subr.bf16.mxu0 0
        %636 = vmatpush1.bf16.msra.mxu0 0
        %637 = vmatprep.subr.bf16.mxu0 0
        %638 = vmatpush1.bf16.msra.mxu0 0
        %639 = vmatprep.subr.bf16.mxu0 0
        %640 = vmatpush1.bf16.msra.mxu0 0
        %641 = vmatprep.subr.bf16.mxu0 0
        %642 = vmatpush1.bf16.msra.mxu0 0
        %643 = vmatprep.subr.bf16.mxu0 0
        %644 = vmatpush1.bf16.msra.mxu0 %v629
        %645 = vmatprep.subr.bf16.mxu0 0
        %646 = vmatpush1.bf16.msra.mxu0 %v422
        %647 = vmatprep.subr.bf16.mxu0 0
        %648 = vmatpush2.bf16.msra.mxu0 0
        %649 = vmatprep.subr.bf16.mxu0 0
        %650 = vmatpush2.bf16.msra.mxu0 0
        %651 = vmatprep.subr.bf16.mxu0 0
        %652 = vmatpush2.bf16.msra.mxu0 0
        %653 = vmatprep.subr.bf16.mxu0 0
        %654 = vmatpush2.bf16.msra.mxu0 0
        %655 = vmatprep.subr.bf16.mxu0 0
        %656 = vmatpush2.bf16.msra.mxu0 0
        %657 = vmatprep.subr.bf16.mxu0 0
        %658 = vmatpush2.bf16.msra.mxu0 0
        %659 = vmatprep.subr.bf16.mxu0 0
        %660 = vmatpush2.bf16.msra.mxu0 0
        %661 = vmatprep.subr.bf16.mxu0 0
        %662 = vmatpush2.bf16.msra.mxu0 0
        %663 = vmatprep.mubr.bf16.mxu0 0
        %664 = vmatmul.mubr.bf16.gmra.mxu0 %v433
        %v665 = vpop.f32.mrf.mxu0
        %v666 = vadd.f32 %v429, %v665
        %v667 = vpop.f32.mrf.mxu0
        %v668 = vpop.f32.mrf.mxu0
        %v669 = vadd.f32 %v429, %v668
        %v670 = vpop.f32.mrf.mxu0
        %671 = vmatprep.mubr.bf16.mxu0 0
        %672 = vmatmul.mubr.bf16.gmra.mxu0 %v436
        %v673 = vpop.f32.mrf.mxu0
        %v674 = vadd.f32 %v429, %v673
        %v675 = vpop.f32.mrf.mxu0
        %v676 = vpop.f32.mrf.mxu0
        %v677 = vadd.f32 %v429, %v676
        %v678 = vpop.f32.mrf.mxu0
        %679 = vmatprep.mubr.bf16.mxu0 0
        %680 = vmatmul.mubr.bf16.gmra.mxu0 %v439
        %v681 = vpop.f32.mrf.mxu0
        %v682 = vadd.f32 %v429, %v681
        %v683 = vpop.f32.mrf.mxu0
        %v684 = vpop.f32.mrf.mxu0
        %v685 = vadd.f32 %v429, %v684
        %v686 = vpop.f32.mrf.mxu0
        %687 = vmatprep.mubr.bf16.mxu0 0
        %688 = vmatmul.mubr.bf16.gmra.mxu0 %v442
        %v689 = vpop.f32.mrf.mxu0
        %v690 = vadd.f32 %v429, %v689
        %v691 = vpop.f32.mrf.mxu0
        %v692 = vpop.f32.mrf.mxu0
        %v693 = vadd.f32 %v429, %v692
        %v694 = vpop.f32.mrf.mxu0
        %695 = vmatprep.mubr.bf16.mxu0 0
        %696 = vmatmul.mubr.bf16.gmra.mxu0 %v445
        %v697 = vpop.f32.mrf.mxu0
        %v698 = vadd.f32 %v429, %v697
        %v699 = vpop.f32.mrf.mxu0
        %v700 = vpop.f32.mrf.mxu0
        %v701 = vadd.f32 %v429, %v700
        %v702 = vpop.f32.mrf.mxu0
        %703 = vmatprep.mubr.bf16.mxu0 0
        %704 = vmatmul.mubr.bf16.gmra.mxu0 %v448
        %v705 = vpop.f32.mrf.mxu0
        %v706 = vadd.f32 %v429, %v705
        %v707 = vpop.f32.mrf.mxu0
        %v708 = vpop.f32.mrf.mxu0
        %v709 = vadd.f32 %v429, %v708
        %v710 = vpop.f32.mrf.mxu0
        %711 = vmatprep.mubr.bf16.mxu0 0
        %712 = vmatmul.mubr.bf16.gmra.mxu0 %v451
        %v713 = vpop.f32.mrf.mxu0
        %v714 = vadd.f32 %v429, %v713
        %v715 = vpop.f32.mrf.mxu0
        %v716 = vpop.f32.mrf.mxu0
        %v717 = vadd.f32 %v429, %v716
        %v718 = vpop.f32.mrf.mxu0
        %719 = vmatprep.mubr.bf16.mxu0 0
        %720 = vmatmul.mubr.bf16.gmra.mxu0 %v454
        %v721 = vpop.f32.mrf.mxu0
        %v722 = vadd.f32 %v429, %v721
        %v723 = vpop.f32.mrf.mxu0
        %v724 = vpop.f32.mrf.mxu0
        %v725 = vadd.f32 %v429, %v724
        %v726 = vpop.f32.mrf.mxu0
        %727 = vmatprep.mubr.bf16.mxu0 0
        %728 = vmatmul.mubr.bf16.gmra.mxu0 %v457
        %v729 = vpop.f32.mrf.mxu0
        %v730 = vadd.f32 %v429, %v729
        %v731 = vpop.f32.mrf.mxu0
        %v732 = vpop.f32.mrf.mxu0
        %v733 = vadd.f32 %v429, %v732
        %v734 = vpop.f32.mrf.mxu0
        %735 = vmatprep.mubr.bf16.mxu0 0
        %736 = vmatmul.mubr.bf16.gmra.mxu0 %v460
        %v737 = vpop.f32.mrf.mxu0
        %v738 = vadd.f32 %v429, %v737
        %v739 = vpop.f32.mrf.mxu0
        %v740 = vpop.f32.mrf.mxu0
        %v741 = vadd.f32 %v429, %v740
        %v742 = vpop.f32.mrf.mxu0
        %743 = vmatprep.mubr.bf16.mxu0 0
        %744 = vmatmul.mubr.bf16.gmra.mxu0 %v463
        %v745 = vpop.f32.mrf.mxu0
        %v746 = vadd.f32 %v429, %v745
        %v747 = vpop.f32.mrf.mxu0
        %v748 = vpop.f32.mrf.mxu0
        %v749 = vadd.f32 %v429, %v748
        %v750 = vpop.f32.mrf.mxu0
        %751 = vmatprep.mubr.bf16.mxu0 0
        %752 = vmatmul.mubr.bf16.gmra.mxu0 %v466
        %v753 = vpop.f32.mrf.mxu0
        %v754 = vadd.f32 %v429, %v753
        %v755 = vpop.f32.mrf.mxu0
        %v756 = vpop.f32.mrf.mxu0
        %v757 = vadd.f32 %v429, %v756
        %v758 = vpop.f32.mrf.mxu0
        %759 = vmatprep.mubr.bf16.mxu0 0
        %760 = vmatmul.mubr.bf16.gmra.mxu0 %v469
        %v761 = vpop.f32.mrf.mxu0
        %v762 = vadd.f32 %v429, %v761
        %v763 = vpop.f32.mrf.mxu0
        %v764 = vpop.f32.mrf.mxu0
        %v765 = vadd.f32 %v429, %v764
        %v766 = vpop.f32.mrf.mxu0
        %767 = vmatprep.mubr.bf16.mxu0 0
        %768 = vmatmul.mubr.bf16.gmra.mxu0 %v472
        %v769 = vpop.f32.mrf.mxu0
        %v770 = vadd.f32 %v429, %v769
        %v771 = vpop.f32.mrf.mxu0
        %v772 = vpop.f32.mrf.mxu0
        %v773 = vadd.f32 %v429, %v772
        %v774 = vpop.f32.mrf.mxu0
        %775 = vmatprep.mubr.bf16.mxu0 0
        %776 = vmatmul.mubr.bf16.gmra.mxu0 %v475
        %v777 = vpop.f32.mrf.mxu0
        %v778 = vadd.f32 %v429, %v777
        %v779 = vpop.f32.mrf.mxu0
        %v780 = vpop.f32.mrf.mxu0
        %v781 = vadd.f32 %v429, %v780
        %v782 = vpop.f32.mrf.mxu0
        %783 = vmatprep.mubr.bf16.mxu0 0
        %784 = vmatmul.mubr.bf16.gmra.mxu0 %v478
        %v785 = vpop.f32.mrf.mxu0
        %v786 = vadd.f32 %v429, %v785
        %v787 = vpop.f32.mrf.mxu0
        %v788 = vpop.f32.mrf.mxu0
        %v789 = vadd.f32 %v429, %v788
        %v790 = vpop.f32.mrf.mxu0
        %791 = vmatprep.mubr.bf16.mxu0 0
        %792 = vmatmul.mubr.bf16.gmra.mxu0 %v481
        %v793 = vpop.f32.mrf.mxu0
        %v794 = vadd.f32 %v429, %v793
        %v795 = vpop.f32.mrf.mxu0
        %v796 = vpop.f32.mrf.mxu0
        %v797 = vadd.f32 %v429, %v796
        %v798 = vpop.f32.mrf.mxu0
        %799 = vmatprep.mubr.bf16.mxu0 0
        %800 = vmatmul.mubr.bf16.gmra.mxu0 %v484
        %v801 = vpop.f32.mrf.mxu0
        %v802 = vadd.f32 %v429, %v801
        %v803 = vpop.f32.mrf.mxu0
        %v804 = vpop.f32.mrf.mxu0
        %v805 = vadd.f32 %v429, %v804
        %v806 = vpop.f32.mrf.mxu0
        %807 = vmatprep.mubr.bf16.mxu0 0
        %808 = vmatmul.mubr.bf16.gmra.mxu0 %v487
        %v809 = vpop.f32.mrf.mxu0
        %v810 = vadd.f32 %v429, %v809
        %v811 = vpop.f32.mrf.mxu0
        %v812 = vpop.f32.mrf.mxu0
        %v813 = vadd.f32 %v429, %v812
        %v814 = vpop.f32.mrf.mxu0
        %815 = vmatprep.mubr.bf16.mxu0 0
        %816 = vmatmul.mubr.bf16.gmra.mxu0 %v490
        %v817 = vpop.f32.mrf.mxu0
        %v818 = vadd.f32 %v429, %v817
        %v819 = vpop.f32.mrf.mxu0
        %v820 = vpop.f32.mrf.mxu0
        %v821 = vadd.f32 %v429, %v820
        %v822 = vpop.f32.mrf.mxu0
        %823 = vmatprep.mubr.bf16.mxu0 0
        %824 = vmatmul.mubr.bf16.gmra.mxu0 %v493
        %v825 = vpop.f32.mrf.mxu0
        %v826 = vadd.f32 %v429, %v825
        %v827 = vpop.f32.mrf.mxu0
        %v828 = vpop.f32.mrf.mxu0
        %v829 = vadd.f32 %v429, %v828
        %v830 = vpop.f32.mrf.mxu0
        %831 = vmatprep.mubr.bf16.mxu0 0
        %832 = vmatmul.mubr.bf16.gmra.mxu0 %v496
        %v833 = vpop.f32.mrf.mxu0
        %v834 = vadd.f32 %v429, %v833
        %v835 = vpop.f32.mrf.mxu0
        %v836 = vpop.f32.mrf.mxu0
        %v837 = vadd.f32 %v429, %v836
        %v838 = vpop.f32.mrf.mxu0
        %839 = vmatprep.mubr.bf16.mxu0 0
        %840 = vmatmul.mubr.bf16.gmra.mxu0 %v499
        %v841 = vpop.f32.mrf.mxu0
        %v842 = vadd.f32 %v429, %v841
        %v843 = vpop.f32.mrf.mxu0
        %v844 = vpop.f32.mrf.mxu0
        %v845 = vadd.f32 %v429, %v844
        %v846 = vpop.f32.mrf.mxu0
        %847 = vmatprep.mubr.bf16.mxu0 0
        %848 = vmatmul.mubr.bf16.gmra.mxu0 %v502
        %v849 = vpop.f32.mrf.mxu0
        %v850 = vadd.f32 %v429, %v849
        %v851 = vpop.f32.mrf.mxu0
        %v852 = vpop.f32.mrf.mxu0
        %v853 = vadd.f32 %v429, %v852
        %v854 = vpop.f32.mrf.mxu0
        %855 = vmatprep.mubr.bf16.mxu0 0
        %856 = vmatmul.mubr.bf16.gmra.mxu0 %v505
        %v857 = vpop.f32.mrf.mxu0
        %v858 = vadd.f32 %v429, %v857
        %v859 = vpop.f32.mrf.mxu0
        %v860 = vpop.f32.mrf.mxu0
        %v861 = vadd.f32 %v429, %v860
        %v862 = vpop.f32.mrf.mxu0
        %863 = vmatprep.mubr.bf16.mxu0 0
        %864 = vmatmul.mubr.bf16.gmra.mxu0 %v508
        %v865 = vpop.f32.mrf.mxu0
        %v866 = vadd.f32 %v429, %v865
        %v867 = vpop.f32.mrf.mxu0
        %v868 = vpop.f32.mrf.mxu0
        %v869 = vadd.f32 %v429, %v868
        %v870 = vpop.f32.mrf.mxu0
        %871 = vmatprep.mubr.bf16.mxu0 0
        %872 = vmatmul.mubr.bf16.gmra.mxu0 %v511
        %v873 = vpop.f32.mrf.mxu0
        %v874 = vadd.f32 %v429, %v873
        %v875 = vpop.f32.mrf.mxu0
        %v876 = vpop.f32.mrf.mxu0
        %v877 = vadd.f32 %v429, %v876
        %v878 = vpop.f32.mrf.mxu0
        %879 = vmatprep.mubr.bf16.mxu0 0
        %880 = vmatmul.mubr.bf16.gmra.mxu0 %v514
        %v881 = vpop.f32.mrf.mxu0
        %v882 = vadd.f32 %v429, %v881
        %v883 = vpop.f32.mrf.mxu0
        %v884 = vpop.f32.mrf.mxu0
        %v885 = vadd.f32 %v429, %v884
        %v886 = vpop.f32.mrf.mxu0
        %887 = vmatprep.mubr.bf16.mxu0 0
        %888 = vmatmul.mubr.bf16.gmra.mxu0 %v517
        %v889 = vpop.f32.mrf.mxu0
        %v890 = vadd.f32 %v429, %v889
        %v891 = vpop.f32.mrf.mxu0
        %v892 = vpop.f32.mrf.mxu0
        %v893 = vadd.f32 %v429, %v892
        %v894 = vpop.f32.mrf.mxu0
        %895 = vmatprep.mubr.bf16.mxu0 0
        %896 = vmatmul.mubr.bf16.gmra.mxu0 %v520
        %v897 = vpop.f32.mrf.mxu0
        %v898 = vadd.f32 %v429, %v897
        %v899 = vpop.f32.mrf.mxu0
        %v900 = vpop.f32.mrf.mxu0
        %v901 = vadd.f32 %v429, %v900
        %v902 = vpop.f32.mrf.mxu0
        %903 = vmatprep.mubr.bf16.mxu0 0
        %904 = vmatmul.mubr.bf16.gmra.mxu0 %v523
        %v905 = vpop.f32.mrf.mxu0
        %v906 = vadd.f32 %v429, %v905
        %v907 = vpop.f32.mrf.mxu0
        %v908 = vpop.f32.mrf.mxu0
        %v909 = vadd.f32 %v429, %v908
        %v910 = vpop.f32.mrf.mxu0
        %911 = vmatprep.mubr.bf16.mxu0 0
        %912 = vmatmul.mubr.bf16.gmra.mxu0 %v526
        %v913 = vpop.f32.mrf.mxu0
        %v914 = vadd.f32 %v429, %v913
        %v915 = vpop.f32.mrf.mxu0
        %v916 = vpop.f32.mrf.mxu0
        %v917 = vadd.f32 %v429, %v916
        %v918 = vpop.f32.mrf.mxu0
        %919 = vmatprep.mubr.bf16.mxu0 0
        %920 = vmatmul.mubr.bf16.gmra.mxu0 %v529
        %v921 = vpop.f32.mrf.mxu0
        %v922 = vadd.f32 %v429, %v921
        %v923 = vpop.f32.mrf.mxu0
        %v924 = vpop.f32.mrf.mxu0
        %v925 = vadd.f32 %v429, %v924
        %v926 = vpop.f32.mrf.mxu0
        %927 = vmatprep.mubr.bf16.mxu0 0
        %928 = vmatmul.mubr.bf16.gmra.mxu0 %v532
        %v929 = vpop.f32.mrf.mxu0
        %v930 = vadd.f32 %v429, %v929
        %v931 = vpop.f32.mrf.mxu0
        %v932 = vpop.f32.mrf.mxu0
        %v933 = vadd.f32 %v429, %v932
        %v934 = vpop.f32.mrf.mxu0
        %935 = vmatprep.mubr.bf16.mxu0 0
        %936 = vmatmul.mubr.bf16.gmra.mxu0 %v535
        %v937 = vpop.f32.mrf.mxu0
        %v938 = vadd.f32 %v429, %v937
        %v939 = vpop.f32.mrf.mxu0
        %v940 = vpop.f32.mrf.mxu0
        %v941 = vadd.f32 %v429, %v940
        %v942 = vpop.f32.mrf.mxu0
        %943 = vmatprep.mubr.bf16.mxu0 0
        %944 = vmatmul.mubr.bf16.gmra.mxu0 %v538
        %v945 = vpop.f32.mrf.mxu0
        %v946 = vadd.f32 %v429, %v945
        %v947 = vpop.f32.mrf.mxu0
        %v948 = vpop.f32.mrf.mxu0
        %v949 = vadd.f32 %v429, %v948
        %v950 = vpop.f32.mrf.mxu0
        %951 = vmatprep.mubr.bf16.mxu0 0
        %952 = vmatmul.mubr.bf16.gmra.mxu0 %v541
        %v953 = vpop.f32.mrf.mxu0
        %v954 = vadd.f32 %v429, %v953
        %v955 = vpop.f32.mrf.mxu0
        %v956 = vpop.f32.mrf.mxu0
        %v957 = vadd.f32 %v429, %v956
        %v958 = vpop.f32.mrf.mxu0
        %959 = vmatprep.mubr.bf16.mxu0 0
        %960 = vmatmul.mubr.bf16.gmra.mxu0 %v544
        %v961 = vpop.f32.mrf.mxu0
        %v962 = vadd.f32 %v429, %v961
        %v963 = vpop.f32.mrf.mxu0
        %v964 = vpop.f32.mrf.mxu0
        %v965 = vadd.f32 %v429, %v964
        %v966 = vpop.f32.mrf.mxu0
        %967 = vmatprep.mubr.bf16.mxu0 0
        %968 = vmatmul.mubr.bf16.gmra.mxu0 %v547
        %v969 = vpop.f32.mrf.mxu0
        %v970 = vadd.f32 %v429, %v969
        %v971 = vpop.f32.mrf.mxu0
        %v972 = vpop.f32.mrf.mxu0
        %v973 = vadd.f32 %v429, %v972
        %v974 = vpop.f32.mrf.mxu0
        %975 = vmatprep.mubr.bf16.mxu0 0
        %976 = vmatmul.mubr.bf16.gmra.mxu0 %v550
        %v977 = vpop.f32.mrf.mxu0
        %v978 = vadd.f32 %v429, %v977
        %v979 = vpop.f32.mrf.mxu0
        %v980 = vpop.f32.mrf.mxu0
        %v981 = vadd.f32 %v429, %v980
        %v982 = vpop.f32.mrf.mxu0
        %983 = vmatprep.mubr.bf16.mxu0 0
        %984 = vmatmul.mubr.bf16.gmra.mxu0 %v553
        %v985 = vpop.f32.mrf.mxu0
        %v986 = vadd.f32 %v429, %v985
        %v987 = vpop.f32.mrf.mxu0
        %v988 = vpop.f32.mrf.mxu0
        %v989 = vadd.f32 %v429, %v988
        %v990 = vpop.f32.mrf.mxu0
        %991 = vmatprep.mubr.bf16.mxu0 0
        %992 = vmatmul.mubr.bf16.gmra.mxu0 %v556
        %v993 = vpop.f32.mrf.mxu0
        %v994 = vadd.f32 %v429, %v993
        %v995 = vpop.f32.mrf.mxu0
        %v996 = vpop.f32.mrf.mxu0
        %v997 = vadd.f32 %v429, %v996
        %v998 = vpop.f32.mrf.mxu0
        %999 = vmatprep.mubr.bf16.mxu0 0
        %1000 = vmatmul.mubr.bf16.gmra.mxu0 %v559
        %v1001 = vpop.f32.mrf.mxu0
        %v1002 = vadd.f32 %v429, %v1001
        %v1003 = vpop.f32.mrf.mxu0
        %v1004 = vpop.f32.mrf.mxu0
        %v1005 = vadd.f32 %v429, %v1004
        %v1006 = vpop.f32.mrf.mxu0
        %1007 = vmatprep.mubr.bf16.mxu0 0
        %1008 = vmatmul.mubr.bf16.gmra.mxu0 %v562
        %v1009 = vpop.f32.mrf.mxu0
        %v1010 = vadd.f32 %v429, %v1009
        %v1011 = vpop.f32.mrf.mxu0
        %v1012 = vpop.f32.mrf.mxu0
        %v1013 = vadd.f32 %v429, %v1012
        %v1014 = vpop.f32.mrf.mxu0
        %1015 = vmatprep.mubr.bf16.mxu0 0
        %1016 = vmatmul.mubr.bf16.gmra.mxu0 %v565
        %v1017 = vpop.f32.mrf.mxu0
        %v1018 = vadd.f32 %v429, %v1017
        %v1019 = vpop.f32.mrf.mxu0
        %v1020 = vpop.f32.mrf.mxu0
        %v1021 = vadd.f32 %v429, %v1020
        %v1022 = vpop.f32.mrf.mxu0
        %1023 = vmatprep.mubr.bf16.mxu0 0
        %1024 = vmatmul.mubr.bf16.gmra.mxu0 %v568
        %v1025 = vpop.f32.mrf.mxu0
        %v1026 = vadd.f32 %v429, %v1025
        %v1027 = vpop.f32.mrf.mxu0
        %v1028 = vpop.f32.mrf.mxu0
        %v1029 = vadd.f32 %v429, %v1028
        %v1030 = vpop.f32.mrf.mxu0
        %1031 = vmatprep.mubr.bf16.mxu0 0
        %1032 = vmatmul.mubr.bf16.gmra.mxu0 %v571
        %v1033 = vpop.f32.mrf.mxu0
        %v1034 = vadd.f32 %v429, %v1033
        %v1035 = vpop.f32.mrf.mxu0
        %v1036 = vpop.f32.mrf.mxu0
        %v1037 = vadd.f32 %v429, %v1036
        %v1038 = vpop.f32.mrf.mxu0
        %1039 = vmatprep.mubr.bf16.mxu0 0
        %1040 = vmatmul.mubr.bf16.gmra.mxu0 %v574
        %v1041 = vpop.f32.mrf.mxu0
        %v1042 = vadd.f32 %v429, %v1041
        %v1043 = vpop.f32.mrf.mxu0
        %v1044 = vpop.f32.mrf.mxu0
        %v1045 = vadd.f32 %v429, %v1044
        %v1046 = vpop.f32.mrf.mxu0
        %1047 = vmatprep.mubr.bf16.mxu0 0
        %1048 = vmatmul.mubr.bf16.gmra.mxu0 %v577
        %v1049 = vpop.f32.mrf.mxu0
        %v1050 = vadd.f32 %v429, %v1049
        %v1051 = vpop.f32.mrf.mxu0
        %v1052 = vpop.f32.mrf.mxu0
        %v1053 = vadd.f32 %v429, %v1052
        %v1054 = vpop.f32.mrf.mxu0
        %1055 = vmatprep.mubr.bf16.mxu0 0
        %1056 = vmatmul.mubr.bf16.gmra.mxu0 %v580
        %v1057 = vpop.f32.mrf.mxu0
        %v1058 = vadd.f32 %v429, %v1057
        %v1059 = vpop.f32.mrf.mxu0
        %v1060 = vpop.f32.mrf.mxu0
        %v1061 = vadd.f32 %v429, %v1060
        %v1062 = vpop.f32.mrf.mxu0
        %1063 = vmatprep.mubr.bf16.mxu0 0
        %1064 = vmatmul.mubr.bf16.gmra.mxu0 %v583
        %v1065 = vpop.f32.mrf.mxu0
        %v1066 = vadd.f32 %v429, %v1065
        %v1067 = vpop.f32.mrf.mxu0
        %v1068 = vpop.f32.mrf.mxu0
        %v1069 = vadd.f32 %v429, %v1068
        %v1070 = vpop.f32.mrf.mxu0
        %1071 = vmatprep.mubr.bf16.mxu0 0
        %1072 = vmatmul.mubr.bf16.gmra.mxu0 %v586
        %v1073 = vpop.f32.mrf.mxu0
        %v1074 = vadd.f32 %v429, %v1073
        %v1075 = vpop.f32.mrf.mxu0
        %v1076 = vpop.f32.mrf.mxu0
        %v1077 = vadd.f32 %v429, %v1076
        %v1078 = vpop.f32.mrf.mxu0
        %1079 = vmatprep.mubr.bf16.mxu0 0
        %1080 = vmatmul.mubr.bf16.gmra.mxu0 %v589
        %v1081 = vpop.f32.mrf.mxu0
        %v1082 = vadd.f32 %v429, %v1081
        %v1083 = vpop.f32.mrf.mxu0
        %v1084 = vpop.f32.mrf.mxu0
        %v1085 = vadd.f32 %v429, %v1084
        %v1086 = vpop.f32.mrf.mxu0
        %1087 = vmatprep.mubr.bf16.mxu0 0
        %1088 = vmatmul.mubr.bf16.gmra.mxu0 %v592
        %v1089 = vpop.f32.mrf.mxu0
        %v1090 = vadd.f32 %v429, %v1089
        %v1091 = vpop.f32.mrf.mxu0
        %v1092 = vpop.f32.mrf.mxu0
        %v1093 = vadd.f32 %v429, %v1092
        %v1094 = vpop.f32.mrf.mxu0
        %1095 = vmatprep.mubr.bf16.mxu0 0
        %1096 = vmatmul.mubr.bf16.gmra.mxu0 %v595
        %v1097 = vpop.f32.mrf.mxu0
        %v1098 = vadd.f32 %v429, %v1097
        %v1099 = vpop.f32.mrf.mxu0
        %v1100 = vpop.f32.mrf.mxu0
        %v1101 = vadd.f32 %v429, %v1100
        %v1102 = vpop.f32.mrf.mxu0
        %1103 = vmatprep.mubr.bf16.mxu0 0
        %1104 = vmatmul.mubr.bf16.gmra.mxu0 %v598
        %v1105 = vpop.f32.mrf.mxu0
        %v1106 = vadd.f32 %v429, %v1105
        %v1107 = vpop.f32.mrf.mxu0
        %v1108 = vpop.f32.mrf.mxu0
        %v1109 = vadd.f32 %v429, %v1108
        %v1110 = vpop.f32.mrf.mxu0
        %1111 = vmatprep.mubr.bf16.mxu0 0
        %1112 = vmatmul.mubr.bf16.gmra.mxu0 %v601
        %v1113 = vpop.f32.mrf.mxu0
        %v1114 = vadd.f32 %v429, %v1113
        %v1115 = vpop.f32.mrf.mxu0
        %v1116 = vpop.f32.mrf.mxu0
        %v1117 = vadd.f32 %v429, %v1116
        %v1118 = vpop.f32.mrf.mxu0
        %1119 = vmatprep.mubr.bf16.mxu0 0
        %1120 = vmatmul.mubr.bf16.gmra.mxu0 %v604
        %v1121 = vpop.f32.mrf.mxu0
        %v1122 = vadd.f32 %v429, %v1121
        %v1123 = vpop.f32.mrf.mxu0
        %v1124 = vpop.f32.mrf.mxu0
        %v1125 = vadd.f32 %v429, %v1124
        %v1126 = vpop.f32.mrf.mxu0
        %1127 = vmatprep.mubr.bf16.mxu0 0
        %1128 = vmatmul.mubr.bf16.gmra.mxu0 %v607
        %v1129 = vpop.f32.mrf.mxu0
        %v1130 = vadd.f32 %v429, %v1129
        %v1131 = vpop.f32.mrf.mxu0
        %v1132 = vpop.f32.mrf.mxu0
        %v1133 = vadd.f32 %v429, %v1132
        %v1134 = vpop.f32.mrf.mxu0
        %1135 = vmatprep.mubr.bf16.mxu0 0
        %1136 = vmatmul.mubr.bf16.gmra.mxu0 %v610
        %v1137 = vpop.f32.mrf.mxu0
        %v1138 = vadd.f32 %v429, %v1137
        %v1139 = vpop.f32.mrf.mxu0
        %v1140 = vpop.f32.mrf.mxu0
        %v1141 = vadd.f32 %v429, %v1140
        %v1142 = vpop.f32.mrf.mxu0
        %1143 = vmatprep.mubr.bf16.mxu0 0
        %1144 = vmatmul.mubr.bf16.gmra.mxu0 %v613
        %v1145 = vpop.f32.mrf.mxu0
        %v1146 = vadd.f32 %v429, %v1145
        %v1147 = vpop.f32.mrf.mxu0
        %v1148 = vpop.f32.mrf.mxu0
        %v1149 = vadd.f32 %v429, %v1148
        %v1150 = vpop.f32.mrf.mxu0
        %1151 = vmatprep.mubr.bf16.mxu0 0
        %1152 = vmatmul.mubr.bf16.gmra.mxu0 %v616
        %v1153 = vpop.f32.mrf.mxu0
        %v1154 = vadd.f32 %v429, %v1153
        %v1155 = vpop.f32.mrf.mxu0
        %v1156 = vpop.f32.mrf.mxu0
        %v1157 = vadd.f32 %v429, %v1156
        %v1158 = vpop.f32.mrf.mxu0
        %1159 = vmatprep.mubr.bf16.mxu0 0
        %1160 = vmatmul.mubr.bf16.gmra.mxu0 %v619
        %v1161 = vpop.f32.mrf.mxu0
        %v1162 = vadd.f32 %v429, %v1161
        %v1163 = vpop.f32.mrf.mxu0
        %v1164 = vpop.f32.mrf.mxu0
        %v1165 = vadd.f32 %v429, %v1164
        %v1166 = vpop.f32.mrf.mxu0
        %1167 = vmatprep.mubr.bf16.mxu0 0
        %1168 = vmatmul.mubr.bf16.gmra.mxu0 %v622
        %v1169 = vpop.f32.mrf.mxu0
        %v1170 = vadd.f32 %v429, %v1169
        %v1171 = vpop.f32.mrf.mxu0
        %v1172 = vpop.f32.mrf.mxu0
        %v1173 = vadd.f32 %v429, %v1172
        %v1174 = vpop.f32.mrf.mxu0
        %1175 = vdwg.mxu0
        %v1176 = vmax.f32 %v666, 0.0
        %v1177 = vmax.f32 %v669, 0.0
        %v1178 = vmax.f32 %v674, 0.0
        %v1179 = vmax.f32 %v677, 0.0
        %v1180 = vmax.f32 %v682, 0.0
        %v1181 = vmax.f32 %v685, 0.0
        %v1182 = vmax.f32 %v690, 0.0
        %v1183 = vmax.f32 %v693, 0.0
        %v1184 = vmax.f32 %v698, 0.0
        %v1185 = vmax.f32 %v701, 0.0
        %v1186 = vmax.f32 %v706, 0.0
        %v1187 = vmax.f32 %v709, 0.0
        %v1188 = vmax.f32 %v714, 0.0
        %v1189 = vmax.f32 %v717, 0.0
        %v1190 = vmax.f32 %v722, 0.0
        %v1191 = vmax.f32 %v725, 0.0
        %v1192 = vmax.f32 %v730, 0.0
        %v1193 = vmax.f32 %v733, 0.0
        %v1194 = vmax.f32 %v738, 0.0
        %v1195 = vmax.f32 %v741, 0.0
        %v1196 = vmax.f32 %v746, 0.0
        %v1197 = vmax.f32 %v749, 0.0
        %v1198 = vmax.f32 %v754, 0.0
        %v1199 = vmax.f32 %v757, 0.0
        %v1200 = vmax.f32 %v762, 0.0
        %v1201 = vmax.f32 %v765, 0.0
        %v1202 = vmax.f32 %v770, 0.0
        %v1203 = vmax.f32 %v773, 0.0
        %v1204 = vmax.f32 %v778, 0.0
        %v1205 = vmax.f32 %v781, 0.0
        %v1206 = vmax.f32 %v786, 0.0
        %v1207 = vmax.f32 %v789, 0.0
        %v1208 = vmax.f32 %v794, 0.0
        %v1209 = vmax.f32 %v797, 0.0
        %v1210 = vmax.f32 %v802, 0.0
        %v1211 = vmax.f32 %v805, 0.0
        %v1212 = vmax.f32 %v810, 0.0
        %v1213 = vmax.f32 %v813, 0.0
        %v1214 = vmax.f32 %v818, 0.0
        %v1215 = vmax.f32 %v821, 0.0
        %v1216 = vmax.f32 %v826, 0.0
        %v1217 = vmax.f32 %v829, 0.0
        %v1218 = vmax.f32 %v834, 0.0
        %v1219 = vmax.f32 %v837, 0.0
        %v1220 = vmax.f32 %v842, 0.0
        %v1221 = vmax.f32 %v845, 0.0
        %v1222 = vmax.f32 %v850, 0.0
        %v1223 = vmax.f32 %v853, 0.0
        %v1224 = vmax.f32 %v858, 0.0
        %v1225 = vmax.f32 %v861, 0.0
        %v1226 = vmax.f32 %v866, 0.0
        %v1227 = vmax.f32 %v869, 0.0
        %v1228 = vmax.f32 %v874, 0.0
        %v1229 = vmax.f32 %v877, 0.0
        %v1230 = vmax.f32 %v882, 0.0
        %v1231 = vmax.f32 %v885, 0.0
        %v1232 = vmax.f32 %v890, 0.0
        %v1233 = vmax.f32 %v893, 0.0
        %v1234 = vmax.f32 %v898, 0.0
        %v1235 = vmax.f32 %v901, 0.0
        %v1236 = vmax.f32 %v906, 0.0
        %v1237 = vmax.f32 %v909, 0.0
        %v1238 = vmax.f32 %v914, 0.0
        %v1239 = vmax.f32 %v917, 0.0
        %v1240 = vmax.f32 %v922, 0.0
        %v1241 = vmax.f32 %v925, 0.0
        %v1242 = vmax.f32 %v930, 0.0
        %v1243 = vmax.f32 %v933, 0.0
        %v1244 = vmax.f32 %v938, 0.0
        %v1245 = vmax.f32 %v941, 0.0
        %v1246 = vmax.f32 %v946, 0.0
        %v1247 = vmax.f32 %v949, 0.0
        %v1248 = vmax.f32 %v954, 0.0
        %v1249 = vmax.f32 %v957, 0.0
        %v1250 = vmax.f32 %v962, 0.0
        %v1251 = vmax.f32 %v965, 0.0
        %v1252 = vmax.f32 %v970, 0.0
        %v1253 = vmax.f32 %v973, 0.0
        %v1254 = vmax.f32 %v978, 0.0
        %v1255 = vmax.f32 %v981, 0.0
        %v1256 = vmax.f32 %v986, 0.0
        %v1257 = vmax.f32 %v989, 0.0
        %v1258 = vmax.f32 %v994, 0.0
        %v1259 = vmax.f32 %v997, 0.0
        %v1260 = vmax.f32 %v1002, 0.0
        %v1261 = vmax.f32 %v1005, 0.0
        %v1262 = vmax.f32 %v1010, 0.0
        %v1263 = vmax.f32 %v1013, 0.0
        %v1264 = vmax.f32 %v1018, 0.0
        %v1265 = vmax.f32 %v1021, 0.0
        %v1266 = vmax.f32 %v1026, 0.0
        %v1267 = vmax.f32 %v1029, 0.0
        %v1268 = vmax.f32 %v1034, 0.0
        %v1269 = vmax.f32 %v1037, 0.0
        %v1270 = vmax.f32 %v1042, 0.0
        %v1271 = vmax.f32 %v1045, 0.0
        %v1272 = vmax.f32 %v1050, 0.0
        %v1273 = vmax.f32 %v1053, 0.0
        %v1274 = vmax.f32 %v1058, 0.0
        %v1275 = vmax.f32 %v1061, 0.0
        %v1276 = vmax.f32 %v1066, 0.0
        %v1277 = vmax.f32 %v1069, 0.0
        %v1278 = vmax.f32 %v1074, 0.0
        %v1279 = vmax.f32 %v1077, 0.0
        %v1280 = vmax.f32 %v1082, 0.0
        %v1281 = vmax.f32 %v1085, 0.0
        %v1282 = vmax.f32 %v1090, 0.0
        %v1283 = vmax.f32 %v1093, 0.0
        %v1284 = vmax.f32 %v1098, 0.0
        %v1285 = vmax.f32 %v1101, 0.0
        %v1286 = vmax.f32 %v1106, 0.0
        %v1287 = vmax.f32 %v1109, 0.0
        %v1288 = vmax.f32 %v1114, 0.0
        %v1289 = vmax.f32 %v1117, 0.0
        %v1290 = vmax.f32 %v1122, 0.0
        %v1291 = vmax.f32 %v1125, 0.0
        %v1292 = vmax.f32 %v1130, 0.0
        %v1293 = vmax.f32 %v1133, 0.0
        %v1294 = vmax.f32 %v1138, 0.0
        %v1295 = vmax.f32 %v1141, 0.0
        %v1296 = vmax.f32 %v1146, 0.0
        %v1297 = vmax.f32 %v1149, 0.0
        %v1298 = vmax.f32 %v1154, 0.0
        %v1299 = vmax.f32 %v1157, 0.0
        %v1300 = vmax.f32 %v1162, 0.0
        %v1301 = vmax.f32 %v1165, 0.0
        %v1302 = vmax.f32 %v1170, 0.0
        %v1303 = vmax.f32 %v1173, 0.0
        %v1304 = vld [vmem:[%s3] sm:$0xff]
        %v1305 = vld [vmem:[%s3 + $0x8] sm:$0xff]
        %v1306 = vld [vmem:[%s3 + $0x10] sm:$0xff]
        %v1307 = vld [vmem:[%s3 + $0x18] sm:$0xff]
        %v1308 = vld [vmem:[%s3 + $0x20] sm:$0xff]
        %v1309 = vld [vmem:[%s3 + $0x28] sm:$0xff]
        %v1310 = vld [vmem:[%s3 + $0x30] sm:$0xff]
        %v1311 = vld [vmem:[%s3 + $0x38] sm:$0xff]
        %v1312 = vld [vmem:[%s3 + $0x40] sm:$0xff]
        %v1313 = vld [vmem:[%s3 + $0x48] sm:$0xff]
        %v1314 = vld [vmem:[%s3 + $0x50] sm:$0xff]
        %v1315 = vld [vmem:[%s3 + $0x58] sm:$0xff]
        %v1316 = vld [vmem:[%s3 + $0x60] sm:$0xff]
        %v1317 = vld [vmem:[%s3 + $0x68] sm:$0xff]
        %v1318 = vld [vmem:[%s3 + $0x70] sm:$0xff]
        %v1319 = vld [vmem:[%s3 + $0x78] sm:$0xff]
        %v1320 = vpack.c.bf16 %v1305, %v1304
        %v1321 = vpack.c.bf16 %v1307, %v1306
        %v1322 = vpack.c.bf16 %v1309, %v1308
        %v1323 = vpack.c.bf16 %v1311, %v1310
        %v1324 = vpack.c.bf16 %v1313, %v1312
        %v1325 = vpack.c.bf16 %v1315, %v1314
        %v1326 = vpack.c.bf16 %v1317, %v1316
        %v1327 = vpack.c.bf16 %v1319, %v1318
        %v1328 = vpack.c.bf16 %v1177, %v1176
        %v1329 = vpack.c.bf16 %v1179, %v1178
        %v1330 = vpack.c.bf16 %v1181, %v1180
        %v1331 = vpack.c.bf16 %v1183, %v1182
        %v1332 = vpack.c.bf16 %v1185, %v1184
        %v1333 = vpack.c.bf16 %v1187, %v1186
        %v1334 = vpack.c.bf16 %v1189, %v1188
        %v1335 = vpack.c.bf16 %v1191, %v1190
        %v1336 = vpack.c.bf16 %v1193, %v1192
        %v1337 = vpack.c.bf16 %v1195, %v1194
        %v1338 = vpack.c.bf16 %v1197, %v1196
        %v1339 = vpack.c.bf16 %v1199, %v1198
        %v1340 = vpack.c.bf16 %v1201, %v1200
        %v1341 = vpack.c.bf16 %v1203, %v1202
        %v1342 = vpack.c.bf16 %v1205, %v1204
        %v1343 = vpack.c.bf16 %v1207, %v1206
        %v1344 = vpack.c.bf16 %v1209, %v1208
        %v1345 = vpack.c.bf16 %v1211, %v1210
        %v1346 = vpack.c.bf16 %v1213, %v1212
        %v1347 = vpack.c.bf16 %v1215, %v1214
        %v1348 = vpack.c.bf16 %v1217, %v1216
        %v1349 = vpack.c.bf16 %v1219, %v1218
        %v1350 = vpack.c.bf16 %v1221, %v1220
        %v1351 = vpack.c.bf16 %v1223, %v1222
        %v1352 = vpack.c.bf16 %v1225, %v1224
        %v1353 = vpack.c.bf16 %v1227, %v1226
        %v1354 = vpack.c.bf16 %v1229, %v1228
        %v1355 = vpack.c.bf16 %v1231, %v1230
        %v1356 = vpack.c.bf16 %v1233, %v1232
        %v1357 = vpack.c.bf16 %v1235, %v1234
        %v1358 = vpack.c.bf16 %v1237, %v1236
        %v1359 = vpack.c.bf16 %v1239, %v1238
        %v1360 = vpack.c.bf16 %v1241, %v1240
        %v1361 = vpack.c.bf16 %v1243, %v1242
        %v1362 = vpack.c.bf16 %v1245, %v1244
        %v1363 = vpack.c.bf16 %v1247, %v1246
        %v1364 = vpack.c.bf16 %v1249, %v1248
        %v1365 = vpack.c.bf16 %v1251, %v1250
        %v1366 = vpack.c.bf16 %v1253, %v1252
        %v1367 = vpack.c.bf16 %v1255, %v1254
        %v1368 = vpack.c.bf16 %v1257, %v1256
        %v1369 = vpack.c.bf16 %v1259, %v1258
        %v1370 = vpack.c.bf16 %v1261, %v1260
        %v1371 = vpack.c.bf16 %v1263, %v1262
        %v1372 = vpack.c.bf16 %v1265, %v1264
        %v1373 = vpack.c.bf16 %v1267, %v1266
        %v1374 = vpack.c.bf16 %v1269, %v1268
        %v1375 = vpack.c.bf16 %v1271, %v1270
        %v1376 = vpack.c.bf16 %v1273, %v1272
        %v1377 = vpack.c.bf16 %v1275, %v1274
        %v1378 = vpack.c.bf16 %v1277, %v1276
        %v1379 = vpack.c.bf16 %v1279, %v1278
        %v1380 = vpack.c.bf16 %v1281, %v1280
        %v1381 = vpack.c.bf16 %v1283, %v1282
        %v1382 = vpack.c.bf16 %v1285, %v1284
        %v1383 = vpack.c.bf16 %v1287, %v1286
        %v1384 = vpack.c.bf16 %v1289, %v1288
        %v1385 = vpack.c.bf16 %v1291, %v1290
        %v1386 = vpack.c.bf16 %v1293, %v1292
        %v1387 = vpack.c.bf16 %v1295, %v1294
        %v1388 = vpack.c.bf16 %v1297, %v1296
        %v1389 = vpack.c.bf16 %v1299, %v1298
        %v1390 = vpack.c.bf16 %v1301, %v1300
        %v1391 = vpack.c.bf16 %v1303, %v1302
        %v1392 = vld [vmem:[%s4] sm:$0x1]
        %v1394 = vlaneseq
        %v1395 = vshrl.u32 %v1394, 7
        %v1396 = vsub.s32 0, %v1395
        %v1397 = vrot.slane %v1392, %v1396
        %1399 = vmatprep.subr.bf16.mxu0 0
        %1400 = vmatpush1.bf16.msra.mxu0 %v1327
        %1401 = vmatprep.subr.bf16.mxu0 0
        %1402 = vmatpush1.bf16.msra.mxu0 %v1326
        %1403 = vmatprep.subr.bf16.mxu0 0
        %1404 = vmatpush1.bf16.msra.mxu0 %v1325
        %1405 = vmatprep.subr.bf16.mxu0 0
        %1406 = vmatpush1.bf16.msra.mxu0 %v1324
        %1407 = vmatprep.subr.bf16.mxu0 0
        %1408 = vmatpush1.bf16.msra.mxu0 %v1323
        %1409 = vmatprep.subr.bf16.mxu0 0
        %1410 = vmatpush1.bf16.msra.mxu0 %v1322
        %1411 = vmatprep.subr.bf16.mxu0 0
        %1412 = vmatpush1.bf16.msra.mxu0 %v1321
        %1413 = vmatprep.subr.bf16.mxu0 0
        %1414 = vmatpush1.bf16.msra.mxu0 %v1320
        %1415 = vmatprep.subr.bf16.mxu0 0
        %1416 = vmatpush2.bf16.msra.mxu0 0
        %1417 = vmatprep.subr.bf16.mxu0 0
        %1418 = vmatpush2.bf16.msra.mxu0 0
        %1419 = vmatprep.subr.bf16.mxu0 0
        %1420 = vmatpush2.bf16.msra.mxu0 0
        %1421 = vmatprep.subr.bf16.mxu0 0
        %1422 = vmatpush2.bf16.msra.mxu0 0
        %1423 = vmatprep.subr.bf16.mxu0 0
        %1424 = vmatpush2.bf16.msra.mxu0 0
        %1425 = vmatprep.subr.bf16.mxu0 0
        %1426 = vmatpush2.bf16.msra.mxu0 0
        %1427 = vmatprep.subr.bf16.mxu0 0
        %1428 = vmatpush2.bf16.msra.mxu0 0
        %1429 = vmatprep.subr.bf16.mxu0 0
        %1430 = vmatpush2.bf16.msra.mxu0 0
        %1431 = vmatprep.mubr.bf16.mxu0 0
        %1432 = vmatmul.mubr.bf16.gmra.mxu0 %v1328
        %v1433 = vpop.f32.mrf.mxu0
        %v1434 = vadd.f32 %v1397, %v1433
        %v1435 = vpop.f32.mrf.mxu0
        %v1436 = vpop.f32.mrf.mxu0
        %v1437 = vadd.f32 %v1397, %v1436
        %v1438 = vpop.f32.mrf.mxu0
        %1439 = vmatprep.mubr.bf16.mxu0 0
        %1440 = vmatmul.mubr.bf16.gmra.mxu0 %v1329
        %v1441 = vpop.f32.mrf.mxu0
        %v1442 = vadd.f32 %v1397, %v1441
        %v1443 = vpop.f32.mrf.mxu0
        %v1444 = vpop.f32.mrf.mxu0
        %v1445 = vadd.f32 %v1397, %v1444
        %v1446 = vpop.f32.mrf.mxu0
        %1447 = vmatprep.mubr.bf16.mxu0 0
        %1448 = vmatmul.mubr.bf16.gmra.mxu0 %v1330
        %v1449 = vpop.f32.mrf.mxu0
        %v1450 = vadd.f32 %v1397, %v1449
        %v1451 = vpop.f32.mrf.mxu0
        %v1452 = vpop.f32.mrf.mxu0
        %v1453 = vadd.f32 %v1397, %v1452
        %v1454 = vpop.f32.mrf.mxu0
        %1455 = vmatprep.mubr.bf16.mxu0 0
        %1456 = vmatmul.mubr.bf16.gmra.mxu0 %v1331
        %v1457 = vpop.f32.mrf.mxu0
        %v1458 = vadd.f32 %v1397, %v1457
        %v1459 = vpop.f32.mrf.mxu0
        %v1460 = vpop.f32.mrf.mxu0
        %v1461 = vadd.f32 %v1397, %v1460
        %v1462 = vpop.f32.mrf.mxu0
        %1463 = vmatprep.mubr.bf16.mxu0 0
        %1464 = vmatmul.mubr.bf16.gmra.mxu0 %v1332
        %v1465 = vpop.f32.mrf.mxu0
        %v1466 = vadd.f32 %v1397, %v1465
        %v1467 = vpop.f32.mrf.mxu0
        %v1468 = vpop.f32.mrf.mxu0
        %v1469 = vadd.f32 %v1397, %v1468
        %v1470 = vpop.f32.mrf.mxu0
        %1471 = vmatprep.mubr.bf16.mxu0 0
        %1472 = vmatmul.mubr.bf16.gmra.mxu0 %v1333
        %v1473 = vpop.f32.mrf.mxu0
        %v1474 = vadd.f32 %v1397, %v1473
        %v1475 = vpop.f32.mrf.mxu0
        %v1476 = vpop.f32.mrf.mxu0
        %v1477 = vadd.f32 %v1397, %v1476
        %v1478 = vpop.f32.mrf.mxu0
        %1479 = vmatprep.mubr.bf16.mxu0 0
        %1480 = vmatmul.mubr.bf16.gmra.mxu0 %v1334
        %v1481 = vpop.f32.mrf.mxu0
        %v1482 = vadd.f32 %v1397, %v1481
        %v1483 = vpop.f32.mrf.mxu0
        %v1484 = vpop.f32.mrf.mxu0
        %v1485 = vadd.f32 %v1397, %v1484
        %v1486 = vpop.f32.mrf.mxu0
        %1487 = vmatprep.mubr.bf16.mxu0 0
        %1488 = vmatmul.mubr.bf16.gmra.mxu0 %v1335
        %v1489 = vpop.f32.mrf.mxu0
        %v1490 = vadd.f32 %v1397, %v1489
        %v1491 = vpop.f32.mrf.mxu0
        %v1492 = vpop.f32.mrf.mxu0
        %v1493 = vadd.f32 %v1397, %v1492
        %v1494 = vpop.f32.mrf.mxu0
        %1495 = vmatprep.mubr.bf16.mxu0 0
        %1496 = vmatmul.mubr.bf16.gmra.mxu0 %v1336
        %v1497 = vpop.f32.mrf.mxu0
        %v1498 = vadd.f32 %v1397, %v1497
        %v1499 = vpop.f32.mrf.mxu0
        %v1500 = vpop.f32.mrf.mxu0
        %v1501 = vadd.f32 %v1397, %v1500
        %v1502 = vpop.f32.mrf.mxu0
        %1503 = vmatprep.mubr.bf16.mxu0 0
        %1504 = vmatmul.mubr.bf16.gmra.mxu0 %v1337
        %v1505 = vpop.f32.mrf.mxu0
        %v1506 = vadd.f32 %v1397, %v1505
        %v1507 = vpop.f32.mrf.mxu0
        %v1508 = vpop.f32.mrf.mxu0
        %v1509 = vadd.f32 %v1397, %v1508
        %v1510 = vpop.f32.mrf.mxu0
        %1511 = vmatprep.mubr.bf16.mxu0 0
        %1512 = vmatmul.mubr.bf16.gmra.mxu0 %v1338
        %v1513 = vpop.f32.mrf.mxu0
        %v1514 = vadd.f32 %v1397, %v1513
        %v1515 = vpop.f32.mrf.mxu0
        %v1516 = vpop.f32.mrf.mxu0
        %v1517 = vadd.f32 %v1397, %v1516
        %v1518 = vpop.f32.mrf.mxu0
        %1519 = vmatprep.mubr.bf16.mxu0 0
        %1520 = vmatmul.mubr.bf16.gmra.mxu0 %v1339
        %v1521 = vpop.f32.mrf.mxu0
        %v1522 = vadd.f32 %v1397, %v1521
        %v1523 = vpop.f32.mrf.mxu0
        %v1524 = vpop.f32.mrf.mxu0
        %v1525 = vadd.f32 %v1397, %v1524
        %v1526 = vpop.f32.mrf.mxu0
        %1527 = vmatprep.mubr.bf16.mxu0 0
        %1528 = vmatmul.mubr.bf16.gmra.mxu0 %v1340
        %v1529 = vpop.f32.mrf.mxu0
        %v1530 = vadd.f32 %v1397, %v1529
        %v1531 = vpop.f32.mrf.mxu0
        %v1532 = vpop.f32.mrf.mxu0
        %v1533 = vadd.f32 %v1397, %v1532
        %v1534 = vpop.f32.mrf.mxu0
        %1535 = vmatprep.mubr.bf16.mxu0 0
        %1536 = vmatmul.mubr.bf16.gmra.mxu0 %v1341
        %v1537 = vpop.f32.mrf.mxu0
        %v1538 = vadd.f32 %v1397, %v1537
        %v1539 = vpop.f32.mrf.mxu0
        %v1540 = vpop.f32.mrf.mxu0
        %v1541 = vadd.f32 %v1397, %v1540
        %v1542 = vpop.f32.mrf.mxu0
        %1543 = vmatprep.mubr.bf16.mxu0 0
        %1544 = vmatmul.mubr.bf16.gmra.mxu0 %v1342
        %v1545 = vpop.f32.mrf.mxu0
        %v1546 = vadd.f32 %v1397, %v1545
        %v1547 = vpop.f32.mrf.mxu0
        %v1548 = vpop.f32.mrf.mxu0
        %v1549 = vadd.f32 %v1397, %v1548
        %v1550 = vpop.f32.mrf.mxu0
        %1551 = vmatprep.mubr.bf16.mxu0 0
        %1552 = vmatmul.mubr.bf16.gmra.mxu0 %v1343
        %v1553 = vpop.f32.mrf.mxu0
        %v1554 = vadd.f32 %v1397, %v1553
        %v1555 = vpop.f32.mrf.mxu0
        %v1556 = vpop.f32.mrf.mxu0
        %v1557 = vadd.f32 %v1397, %v1556
        %v1558 = vpop.f32.mrf.mxu0
        %1559 = vmatprep.mubr.bf16.mxu0 0
        %1560 = vmatmul.mubr.bf16.gmra.mxu0 %v1344
        %v1561 = vpop.f32.mrf.mxu0
        %v1562 = vadd.f32 %v1397, %v1561
        %v1563 = vpop.f32.mrf.mxu0
        %v1564 = vpop.f32.mrf.mxu0
        %v1565 = vadd.f32 %v1397, %v1564
        %v1566 = vpop.f32.mrf.mxu0
        %1567 = vmatprep.mubr.bf16.mxu0 0
        %1568 = vmatmul.mubr.bf16.gmra.mxu0 %v1345
        %v1569 = vpop.f32.mrf.mxu0
        %v1570 = vadd.f32 %v1397, %v1569
        %v1571 = vpop.f32.mrf.mxu0
        %v1572 = vpop.f32.mrf.mxu0
        %v1573 = vadd.f32 %v1397, %v1572
        %v1574 = vpop.f32.mrf.mxu0
        %1575 = vmatprep.mubr.bf16.mxu0 0
        %1576 = vmatmul.mubr.bf16.gmra.mxu0 %v1346
        %v1577 = vpop.f32.mrf.mxu0
        %v1578 = vadd.f32 %v1397, %v1577
        %v1579 = vpop.f32.mrf.mxu0
        %v1580 = vpop.f32.mrf.mxu0
        %v1581 = vadd.f32 %v1397, %v1580
        %v1582 = vpop.f32.mrf.mxu0
        %1583 = vmatprep.mubr.bf16.mxu0 0
        %1584 = vmatmul.mubr.bf16.gmra.mxu0 %v1347
        %v1585 = vpop.f32.mrf.mxu0
        %v1586 = vadd.f32 %v1397, %v1585
        %v1587 = vpop.f32.mrf.mxu0
        %v1588 = vpop.f32.mrf.mxu0
        %v1589 = vadd.f32 %v1397, %v1588
        %v1590 = vpop.f32.mrf.mxu0
        %1591 = vmatprep.mubr.bf16.mxu0 0
        %1592 = vmatmul.mubr.bf16.gmra.mxu0 %v1348
        %v1593 = vpop.f32.mrf.mxu0
        %v1594 = vadd.f32 %v1397, %v1593
        %v1595 = vpop.f32.mrf.mxu0
        %v1596 = vpop.f32.mrf.mxu0
        %v1597 = vadd.f32 %v1397, %v1596
        %v1598 = vpop.f32.mrf.mxu0
        %1599 = vmatprep.mubr.bf16.mxu0 0
        %1600 = vmatmul.mubr.bf16.gmra.mxu0 %v1349
        %v1601 = vpop.f32.mrf.mxu0
        %v1602 = vadd.f32 %v1397, %v1601
        %v1603 = vpop.f32.mrf.mxu0
        %v1604 = vpop.f32.mrf.mxu0
        %v1605 = vadd.f32 %v1397, %v1604
        %v1606 = vpop.f32.mrf.mxu0
        %1607 = vmatprep.mubr.bf16.mxu0 0
        %1608 = vmatmul.mubr.bf16.gmra.mxu0 %v1350
        %v1609 = vpop.f32.mrf.mxu0
        %v1610 = vadd.f32 %v1397, %v1609
        %v1611 = vpop.f32.mrf.mxu0
        %v1612 = vpop.f32.mrf.mxu0
        %v1613 = vadd.f32 %v1397, %v1612
        %v1614 = vpop.f32.mrf.mxu0
        %1615 = vmatprep.mubr.bf16.mxu0 0
        %1616 = vmatmul.mubr.bf16.gmra.mxu0 %v1351
        %v1617 = vpop.f32.mrf.mxu0
        %v1618 = vadd.f32 %v1397, %v1617
        %v1619 = vpop.f32.mrf.mxu0
        %v1620 = vpop.f32.mrf.mxu0
        %v1621 = vadd.f32 %v1397, %v1620
        %v1622 = vpop.f32.mrf.mxu0
        %1623 = vmatprep.mubr.bf16.mxu0 0
        %1624 = vmatmul.mubr.bf16.gmra.mxu0 %v1352
        %v1625 = vpop.f32.mrf.mxu0
        %v1626 = vadd.f32 %v1397, %v1625
        %v1627 = vpop.f32.mrf.mxu0
        %v1628 = vpop.f32.mrf.mxu0
        %v1629 = vadd.f32 %v1397, %v1628
        %v1630 = vpop.f32.mrf.mxu0
        %1631 = vmatprep.mubr.bf16.mxu0 0
        %1632 = vmatmul.mubr.bf16.gmra.mxu0 %v1353
        %v1633 = vpop.f32.mrf.mxu0
        %v1634 = vadd.f32 %v1397, %v1633
        %v1635 = vpop.f32.mrf.mxu0
        %v1636 = vpop.f32.mrf.mxu0
        %v1637 = vadd.f32 %v1397, %v1636
        %v1638 = vpop.f32.mrf.mxu0
        %1639 = vmatprep.mubr.bf16.mxu0 0
        %1640 = vmatmul.mubr.bf16.gmra.mxu0 %v1354
        %v1641 = vpop.f32.mrf.mxu0
        %v1642 = vadd.f32 %v1397, %v1641
        %v1643 = vpop.f32.mrf.mxu0
        %v1644 = vpop.f32.mrf.mxu0
        %v1645 = vadd.f32 %v1397, %v1644
        %v1646 = vpop.f32.mrf.mxu0
        %1647 = vmatprep.mubr.bf16.mxu0 0
        %1648 = vmatmul.mubr.bf16.gmra.mxu0 %v1355
        %v1649 = vpop.f32.mrf.mxu0
        %v1650 = vadd.f32 %v1397, %v1649
        %v1651 = vpop.f32.mrf.mxu0
        %v1652 = vpop.f32.mrf.mxu0
        %v1653 = vadd.f32 %v1397, %v1652
        %v1654 = vpop.f32.mrf.mxu0
        %1655 = vmatprep.mubr.bf16.mxu0 0
        %1656 = vmatmul.mubr.bf16.gmra.mxu0 %v1356
        %v1657 = vpop.f32.mrf.mxu0
        %v1658 = vadd.f32 %v1397, %v1657
        %v1659 = vpop.f32.mrf.mxu0
        %v1660 = vpop.f32.mrf.mxu0
        %v1661 = vadd.f32 %v1397, %v1660
        %v1662 = vpop.f32.mrf.mxu0
        %1663 = vmatprep.mubr.bf16.mxu0 0
        %1664 = vmatmul.mubr.bf16.gmra.mxu0 %v1357
        %v1665 = vpop.f32.mrf.mxu0
        %v1666 = vadd.f32 %v1397, %v1665
        %v1667 = vpop.f32.mrf.mxu0
        %v1668 = vpop.f32.mrf.mxu0
        %v1669 = vadd.f32 %v1397, %v1668
        %v1670 = vpop.f32.mrf.mxu0
        %1671 = vmatprep.mubr.bf16.mxu0 0
        %1672 = vmatmul.mubr.bf16.gmra.mxu0 %v1358
        %v1673 = vpop.f32.mrf.mxu0
        %v1674 = vadd.f32 %v1397, %v1673
        %v1675 = vpop.f32.mrf.mxu0
        %v1676 = vpop.f32.mrf.mxu0
        %v1677 = vadd.f32 %v1397, %v1676
        %v1678 = vpop.f32.mrf.mxu0
        %1679 = vmatprep.mubr.bf16.mxu0 0
        %1680 = vmatmul.mubr.bf16.gmra.mxu0 %v1359
        %v1681 = vpop.f32.mrf.mxu0
        %v1682 = vadd.f32 %v1397, %v1681
        %v1683 = vpop.f32.mrf.mxu0
        %v1684 = vpop.f32.mrf.mxu0
        %v1685 = vadd.f32 %v1397, %v1684
        %v1686 = vpop.f32.mrf.mxu0
        %1687 = vmatprep.mubr.bf16.mxu0 0
        %1688 = vmatmul.mubr.bf16.gmra.mxu0 %v1360
        %v1689 = vpop.f32.mrf.mxu0
        %v1690 = vadd.f32 %v1397, %v1689
        %v1691 = vpop.f32.mrf.mxu0
        %v1692 = vpop.f32.mrf.mxu0
        %v1693 = vadd.f32 %v1397, %v1692
        %v1694 = vpop.f32.mrf.mxu0
        %1695 = vmatprep.mubr.bf16.mxu0 0
        %1696 = vmatmul.mubr.bf16.gmra.mxu0 %v1361
        %v1697 = vpop.f32.mrf.mxu0
        %v1698 = vadd.f32 %v1397, %v1697
        %v1699 = vpop.f32.mrf.mxu0
        %v1700 = vpop.f32.mrf.mxu0
        %v1701 = vadd.f32 %v1397, %v1700
        %v1702 = vpop.f32.mrf.mxu0
        %1703 = vmatprep.mubr.bf16.mxu0 0
        %1704 = vmatmul.mubr.bf16.gmra.mxu0 %v1362
        %v1705 = vpop.f32.mrf.mxu0
        %v1706 = vadd.f32 %v1397, %v1705
        %v1707 = vpop.f32.mrf.mxu0
        %v1708 = vpop.f32.mrf.mxu0
        %v1709 = vadd.f32 %v1397, %v1708
        %v1710 = vpop.f32.mrf.mxu0
        %1711 = vmatprep.mubr.bf16.mxu0 0
        %1712 = vmatmul.mubr.bf16.gmra.mxu0 %v1363
        %v1713 = vpop.f32.mrf.mxu0
        %v1714 = vadd.f32 %v1397, %v1713
        %v1715 = vpop.f32.mrf.mxu0
        %v1716 = vpop.f32.mrf.mxu0
        %v1717 = vadd.f32 %v1397, %v1716
        %v1718 = vpop.f32.mrf.mxu0
        %1719 = vmatprep.mubr.bf16.mxu0 0
        %1720 = vmatmul.mubr.bf16.gmra.mxu0 %v1364
        %v1721 = vpop.f32.mrf.mxu0
        %v1722 = vadd.f32 %v1397, %v1721
        %v1723 = vpop.f32.mrf.mxu0
        %v1724 = vpop.f32.mrf.mxu0
        %v1725 = vadd.f32 %v1397, %v1724
        %v1726 = vpop.f32.mrf.mxu0
        %1727 = vmatprep.mubr.bf16.mxu0 0
        %1728 = vmatmul.mubr.bf16.gmra.mxu0 %v1365
        %v1729 = vpop.f32.mrf.mxu0
        %v1730 = vadd.f32 %v1397, %v1729
        %v1731 = vpop.f32.mrf.mxu0
        %v1732 = vpop.f32.mrf.mxu0
        %v1733 = vadd.f32 %v1397, %v1732
        %v1734 = vpop.f32.mrf.mxu0
        %1735 = vmatprep.mubr.bf16.mxu0 0
        %1736 = vmatmul.mubr.bf16.gmra.mxu0 %v1366
        %v1737 = vpop.f32.mrf.mxu0
        %v1738 = vadd.f32 %v1397, %v1737
        %v1739 = vpop.f32.mrf.mxu0
        %v1740 = vpop.f32.mrf.mxu0
        %v1741 = vadd.f32 %v1397, %v1740
        %v1742 = vpop.f32.mrf.mxu0
        %1743 = vmatprep.mubr.bf16.mxu0 0
        %1744 = vmatmul.mubr.bf16.gmra.mxu0 %v1367
        %v1745 = vpop.f32.mrf.mxu0
        %v1746 = vadd.f32 %v1397, %v1745
        %v1747 = vpop.f32.mrf.mxu0
        %v1748 = vpop.f32.mrf.mxu0
        %v1749 = vadd.f32 %v1397, %v1748
        %v1750 = vpop.f32.mrf.mxu0
        %1751 = vmatprep.mubr.bf16.mxu0 0
        %1752 = vmatmul.mubr.bf16.gmra.mxu0 %v1368
        %v1753 = vpop.f32.mrf.mxu0
        %v1754 = vadd.f32 %v1397, %v1753
        %v1755 = vpop.f32.mrf.mxu0
        %v1756 = vpop.f32.mrf.mxu0
        %v1757 = vadd.f32 %v1397, %v1756
        %v1758 = vpop.f32.mrf.mxu0
        %1759 = vmatprep.mubr.bf16.mxu0 0
        %1760 = vmatmul.mubr.bf16.gmra.mxu0 %v1369
        %v1761 = vpop.f32.mrf.mxu0
        %v1762 = vadd.f32 %v1397, %v1761
        %v1763 = vpop.f32.mrf.mxu0
        %v1764 = vpop.f32.mrf.mxu0
        %v1765 = vadd.f32 %v1397, %v1764
        %v1766 = vpop.f32.mrf.mxu0
        %1767 = vmatprep.mubr.bf16.mxu0 0
        %1768 = vmatmul.mubr.bf16.gmra.mxu0 %v1370
        %v1769 = vpop.f32.mrf.mxu0
        %v1770 = vadd.f32 %v1397, %v1769
        %v1771 = vpop.f32.mrf.mxu0
        %v1772 = vpop.f32.mrf.mxu0
        %v1773 = vadd.f32 %v1397, %v1772
        %v1774 = vpop.f32.mrf.mxu0
        %1775 = vmatprep.mubr.bf16.mxu0 0
        %1776 = vmatmul.mubr.bf16.gmra.mxu0 %v1371
        %v1777 = vpop.f32.mrf.mxu0
        %v1778 = vadd.f32 %v1397, %v1777
        %v1779 = vpop.f32.mrf.mxu0
        %v1780 = vpop.f32.mrf.mxu0
        %v1781 = vadd.f32 %v1397, %v1780
        %v1782 = vpop.f32.mrf.mxu0
        %1783 = vmatprep.mubr.bf16.mxu0 0
        %1784 = vmatmul.mubr.bf16.gmra.mxu0 %v1372
        %v1785 = vpop.f32.mrf.mxu0
        %v1786 = vadd.f32 %v1397, %v1785
        %v1787 = vpop.f32.mrf.mxu0
        %v1788 = vpop.f32.mrf.mxu0
        %v1789 = vadd.f32 %v1397, %v1788
        %v1790 = vpop.f32.mrf.mxu0
        %1791 = vmatprep.mubr.bf16.mxu0 0
        %1792 = vmatmul.mubr.bf16.gmra.mxu0 %v1373
        %v1793 = vpop.f32.mrf.mxu0
        %v1794 = vadd.f32 %v1397, %v1793
        %v1795 = vpop.f32.mrf.mxu0
        %v1796 = vpop.f32.mrf.mxu0
        %v1797 = vadd.f32 %v1397, %v1796
        %v1798 = vpop.f32.mrf.mxu0
        %1799 = vmatprep.mubr.bf16.mxu0 0
        %1800 = vmatmul.mubr.bf16.gmra.mxu0 %v1374
        %v1801 = vpop.f32.mrf.mxu0
        %v1802 = vadd.f32 %v1397, %v1801
        %v1803 = vpop.f32.mrf.mxu0
        %v1804 = vpop.f32.mrf.mxu0
        %v1805 = vadd.f32 %v1397, %v1804
        %v1806 = vpop.f32.mrf.mxu0
        %1807 = vmatprep.mubr.bf16.mxu0 0
        %1808 = vmatmul.mubr.bf16.gmra.mxu0 %v1375
        %v1809 = vpop.f32.mrf.mxu0
        %v1810 = vadd.f32 %v1397, %v1809
        %v1811 = vpop.f32.mrf.mxu0
        %v1812 = vpop.f32.mrf.mxu0
        %v1813 = vadd.f32 %v1397, %v1812
        %v1814 = vpop.f32.mrf.mxu0
        %1815 = vmatprep.mubr.bf16.mxu0 0
        %1816 = vmatmul.mubr.bf16.gmra.mxu0 %v1376
        %v1817 = vpop.f32.mrf.mxu0
        %v1818 = vadd.f32 %v1397, %v1817
        %v1819 = vpop.f32.mrf.mxu0
        %v1820 = vpop.f32.mrf.mxu0
        %v1821 = vadd.f32 %v1397, %v1820
        %v1822 = vpop.f32.mrf.mxu0
        %1823 = vmatprep.mubr.bf16.mxu0 0
        %1824 = vmatmul.mubr.bf16.gmra.mxu0 %v1377
        %v1825 = vpop.f32.mrf.mxu0
        %v1826 = vadd.f32 %v1397, %v1825
        %v1827 = vpop.f32.mrf.mxu0
        %v1828 = vpop.f32.mrf.mxu0
        %v1829 = vadd.f32 %v1397, %v1828
        %v1830 = vpop.f32.mrf.mxu0
        %1831 = vmatprep.mubr.bf16.mxu0 0
        %1832 = vmatmul.mubr.bf16.gmra.mxu0 %v1378
        %v1833 = vpop.f32.mrf.mxu0
        %v1834 = vadd.f32 %v1397, %v1833
        %v1835 = vpop.f32.mrf.mxu0
        %v1836 = vpop.f32.mrf.mxu0
        %v1837 = vadd.f32 %v1397, %v1836
        %v1838 = vpop.f32.mrf.mxu0
        %1839 = vmatprep.mubr.bf16.mxu0 0
        %1840 = vmatmul.mubr.bf16.gmra.mxu0 %v1379
        %v1841 = vpop.f32.mrf.mxu0
        %v1842 = vadd.f32 %v1397, %v1841
        %v1843 = vpop.f32.mrf.mxu0
        %v1844 = vpop.f32.mrf.mxu0
        %v1845 = vadd.f32 %v1397, %v1844
        %v1846 = vpop.f32.mrf.mxu0
        %1847 = vmatprep.mubr.bf16.mxu0 0
        %1848 = vmatmul.mubr.bf16.gmra.mxu0 %v1380
        %v1849 = vpop.f32.mrf.mxu0
        %v1850 = vadd.f32 %v1397, %v1849
        %v1851 = vpop.f32.mrf.mxu0
        %v1852 = vpop.f32.mrf.mxu0
        %v1853 = vadd.f32 %v1397, %v1852
        %v1854 = vpop.f32.mrf.mxu0
        %1855 = vmatprep.mubr.bf16.mxu0 0
        %1856 = vmatmul.mubr.bf16.gmra.mxu0 %v1381
        %v1857 = vpop.f32.mrf.mxu0
        %v1858 = vadd.f32 %v1397, %v1857
        %v1859 = vpop.f32.mrf.mxu0
        %v1860 = vpop.f32.mrf.mxu0
        %v1861 = vadd.f32 %v1397, %v1860
        %v1862 = vpop.f32.mrf.mxu0
        %1863 = vmatprep.mubr.bf16.mxu0 0
        %1864 = vmatmul.mubr.bf16.gmra.mxu0 %v1382
        %v1865 = vpop.f32.mrf.mxu0
        %v1866 = vadd.f32 %v1397, %v1865
        %v1867 = vpop.f32.mrf.mxu0
        %v1868 = vpop.f32.mrf.mxu0
        %v1869 = vadd.f32 %v1397, %v1868
        %v1870 = vpop.f32.mrf.mxu0
        %1871 = vmatprep.mubr.bf16.mxu0 0
        %1872 = vmatmul.mubr.bf16.gmra.mxu0 %v1383
        %v1873 = vpop.f32.mrf.mxu0
        %v1874 = vadd.f32 %v1397, %v1873
        %v1875 = vpop.f32.mrf.mxu0
        %v1876 = vpop.f32.mrf.mxu0
        %v1877 = vadd.f32 %v1397, %v1876
        %v1878 = vpop.f32.mrf.mxu0
        %1879 = vmatprep.mubr.bf16.mxu0 0
        %1880 = vmatmul.mubr.bf16.gmra.mxu0 %v1384
        %v1881 = vpop.f32.mrf.mxu0
        %v1882 = vadd.f32 %v1397, %v1881
        %v1883 = vpop.f32.mrf.mxu0
        %v1884 = vpop.f32.mrf.mxu0
        %v1885 = vadd.f32 %v1397, %v1884
        %v1886 = vpop.f32.mrf.mxu0
        %1887 = vmatprep.mubr.bf16.mxu0 0
        %1888 = vmatmul.mubr.bf16.gmra.mxu0 %v1385
        %v1889 = vpop.f32.mrf.mxu0
        %v1890 = vadd.f32 %v1397, %v1889
        %v1891 = vpop.f32.mrf.mxu0
        %v1892 = vpop.f32.mrf.mxu0
        %v1893 = vadd.f32 %v1397, %v1892
        %v1894 = vpop.f32.mrf.mxu0
        %1895 = vmatprep.mubr.bf16.mxu0 0
        %1896 = vmatmul.mubr.bf16.gmra.mxu0 %v1386
        %v1897 = vpop.f32.mrf.mxu0
        %v1898 = vadd.f32 %v1397, %v1897
        %v1899 = vpop.f32.mrf.mxu0
        %v1900 = vpop.f32.mrf.mxu0
        %v1901 = vadd.f32 %v1397, %v1900
        %v1902 = vpop.f32.mrf.mxu0
        %1903 = vmatprep.mubr.bf16.mxu0 0
        %1904 = vmatmul.mubr.bf16.gmra.mxu0 %v1387
        %v1905 = vpop.f32.mrf.mxu0
        %v1906 = vadd.f32 %v1397, %v1905
        %v1907 = vpop.f32.mrf.mxu0
        %v1908 = vpop.f32.mrf.mxu0
        %v1909 = vadd.f32 %v1397, %v1908
        %v1910 = vpop.f32.mrf.mxu0
        %1911 = vmatprep.mubr.bf16.mxu0 0
        %1912 = vmatmul.mubr.bf16.gmra.mxu0 %v1388
        %v1913 = vpop.f32.mrf.mxu0
        %v1914 = vadd.f32 %v1397, %v1913
        %v1915 = vpop.f32.mrf.mxu0
        %v1916 = vpop.f32.mrf.mxu0
        %v1917 = vadd.f32 %v1397, %v1916
        %v1918 = vpop.f32.mrf.mxu0
        %1919 = vmatprep.mubr.bf16.mxu0 0
        %1920 = vmatmul.mubr.bf16.gmra.mxu0 %v1389
        %v1921 = vpop.f32.mrf.mxu0
        %v1922 = vadd.f32 %v1397, %v1921
        %v1923 = vpop.f32.mrf.mxu0
        %v1924 = vpop.f32.mrf.mxu0
        %v1925 = vadd.f32 %v1397, %v1924
        %v1926 = vpop.f32.mrf.mxu0
        %1927 = vmatprep.mubr.bf16.mxu0 0
        %1928 = vmatmul.mubr.bf16.gmra.mxu0 %v1390
        %v1929 = vpop.f32.mrf.mxu0
        %v1930 = vadd.f32 %v1397, %v1929
        %v1931 = vpop.f32.mrf.mxu0
        %v1932 = vpop.f32.mrf.mxu0
        %v1933 = vadd.f32 %v1397, %v1932
        %v1934 = vpop.f32.mrf.mxu0
        %1935 = vmatprep.mubr.bf16.mxu0 0
        %1936 = vmatmul.mubr.bf16.gmra.mxu0 %v1391
        %v1937 = vpop.f32.mrf.mxu0
        %v1938 = vadd.f32 %v1397, %v1937
        %v1939 = vpop.f32.mrf.mxu0
        %v1940 = vpop.f32.mrf.mxu0
        %v1941 = vadd.f32 %v1397, %v1940
        %v1942 = vpop.f32.mrf.mxu0
        %1943 = vdwg.mxu0
        %1944 = vst [vmem:[%s218] sm:$0xff] %v1434
        %1945 = vst [vmem:[%s218 + $0x8] sm:$0xff] %v1437
        %1946 = vst [vmem:[%s218 + $0x10] sm:$0xff] %v1442
        %1947 = vst [vmem:[%s218 + $0x18] sm:$0xff] %v1445
        %1948 = vst [vmem:[%s218 + $0x20] sm:$0xff] %v1450
        %1949 = vst [vmem:[%s218 + $0x28] sm:$0xff] %v1453
        %1950 = vst [vmem:[%s218 + $0x30] sm:$0xff] %v1458
        %1951 = vst [vmem:[%s218 + $0x38] sm:$0xff] %v1461
        %1952 = vst [vmem:[%s218 + $0x40] sm:$0xff] %v1466
        %1953 = vst [vmem:[%s218 + $0x48] sm:$0xff] %v1469
        %1954 = vst [vmem:[%s218 + $0x50] sm:$0xff] %v1474
        %1955 = vst [vmem:[%s218 + $0x58] sm:$0xff] %v1477
        %1956 = vst [vmem:[%s218 + $0x60] sm:$0xff] %v1482
        %1957 = vst [vmem:[%s218 + $0x68] sm:$0xff] %v1485
        %1958 = vst [vmem:[%s218 + $0x70] sm:$0xff] %v1490
        %1959 = vst [vmem:[%s218 + $0x78] sm:$0xff] %v1493
        %1960 = vst [vmem:[%s218 + $0x80] sm:$0xff] %v1498
        %1961 = vst [vmem:[%s218 + $0x88] sm:$0xff] %v1501
        %1962 = vst [vmem:[%s218 + $0x90] sm:$0xff] %v1506
        %1963 = vst [vmem:[%s218 + $0x98] sm:$0xff] %v1509
        %1964 = vst [vmem:[%s218 + $0xa0] sm:$0xff] %v1514
        %1965 = vst [vmem:[%s218 + $0xa8] sm:$0xff] %v1517
        %1966 = vst [vmem:[%s218 + $0xb0] sm:$0xff] %v1522
        %1967 = vst [vmem:[%s218 + $0xb8] sm:$0xff] %v1525
        %1968 = vst [vmem:[%s218 + $0xc0] sm:$0xff] %v1530
        %1969 = vst [vmem:[%s218 + $0xc8] sm:$0xff] %v1533
        %1970 = vst [vmem:[%s218 + $0xd0] sm:$0xff] %v1538
        %1971 = vst [vmem:[%s218 + $0xd8] sm:$0xff] %v1541
        %1972 = vst [vmem:[%s218 + $0xe0] sm:$0xff] %v1546
        %1973 = vst [vmem:[%s218 + $0xe8] sm:$0xff] %v1549
        %1974 = vst [vmem:[%s218 + $0xf0] sm:$0xff] %v1554
        %1975 = vst [vmem:[%s218 + $0xf8] sm:$0xff] %v1557
        %1976 = vst [vmem:[%s218 + $0x100] sm:$0xff] %v1562
        %1977 = vst [vmem:[%s218 + $0x108] sm:$0xff] %v1565
        %1978 = vst [vmem:[%s218 + $0x110] sm:$0xff] %v1570
        %1979 = vst [vmem:[%s218 + $0x118] sm:$0xff] %v1573
        %1980 = vst [vmem:[%s218 + $0x120] sm:$0xff] %v1578
        %1981 = vst [vmem:[%s218 + $0x128] sm:$0xff] %v1581
        %1982 = vst [vmem:[%s218 + $0x130] sm:$0xff] %v1586
        %1983 = vst [vmem:[%s218 + $0x138] sm:$0xff] %v1589
        %1984 = vst [vmem:[%s218 + $0x140] sm:$0xff] %v1594
        %1985 = vst [vmem:[%s218 + $0x148] sm:$0xff] %v1597
        %1986 = vst [vmem:[%s218 + $0x150] sm:$0xff] %v1602
        %1987 = vst [vmem:[%s218 + $0x158] sm:$0xff] %v1605
        %1988 = vst [vmem:[%s218 + $0x160] sm:$0xff] %v1610
        %1989 = vst [vmem:[%s218 + $0x168] sm:$0xff] %v1613
        %1990 = vst [vmem:[%s218 + $0x170] sm:$0xff] %v1618
        %1991 = vst [vmem:[%s218 + $0x178] sm:$0xff] %v1621
        %1992 = vst [vmem:[%s218 + $0x180] sm:$0xff] %v1626
        %1993 = vst [vmem:[%s218 + $0x188] sm:$0xff] %v1629
        %1994 = vst [vmem:[%s218 + $0x190] sm:$0xff] %v1634
        %1995 = vst [vmem:[%s218 + $0x198] sm:$0xff] %v1637
        %1996 = vst [vmem:[%s218 + $0x1a0] sm:$0xff] %v1642
        %1997 = vst [vmem:[%s218 + $0x1a8] sm:$0xff] %v1645
        %1998 = vst [vmem:[%s218 + $0x1b0] sm:$0xff] %v1650
        %1999 = vst [vmem:[%s218 + $0x1b8] sm:$0xff] %v1653
        %2000 = vst [vmem:[%s218 + $0x1c0] sm:$0xff] %v1658
        %2001 = vst [vmem:[%s218 + $0x1c8] sm:$0xff] %v1661
        %2002 = vst [vmem:[%s218 + $0x1d0] sm:$0xff] %v1666
        %2003 = vst [vmem:[%s218 + $0x1d8] sm:$0xff] %v1669
        %2004 = vst [vmem:[%s218 + $0x1e0] sm:$0xff] %v1674
        %2005 = vst [vmem:[%s218 + $0x1e8] sm:$0xff] %v1677
        %2006 = vst [vmem:[%s218 + $0x1f0] sm:$0xff] %v1682
        %2007 = vst [vmem:[%s218 + $0x1f8] sm:$0xff] %v1685
        %2008 = vst [vmem:[%s218 + $0x200] sm:$0xff] %v1690
        %2009 = vst [vmem:[%s218 + $0x208] sm:$0xff] %v1693
        %2010 = vst [vmem:[%s218 + $0x210] sm:$0xff] %v1698
        %2011 = vst [vmem:[%s218 + $0x218] sm:$0xff] %v1701
        %2012 = vst [vmem:[%s218 + $0x220] sm:$0xff] %v1706
        %2013 = vst [vmem:[%s218 + $0x228] sm:$0xff] %v1709
        %2014 = vst [vmem:[%s218 + $0x230] sm:$0xff] %v1714
        %2015 = vst [vmem:[%s218 + $0x238] sm:$0xff] %v1717
        %2016 = vst [vmem:[%s218 + $0x240] sm:$0xff] %v1722
        %2017 = vst [vmem:[%s218 + $0x248] sm:$0xff] %v1725
        %2018 = vst [vmem:[%s218 + $0x250] sm:$0xff] %v1730
        %2019 = vst [vmem:[%s218 + $0x258] sm:$0xff] %v1733
        %2020 = vst [vmem:[%s218 + $0x260] sm:$0xff] %v1738
        %2021 = vst [vmem:[%s218 + $0x268] sm:$0xff] %v1741
        %2022 = vst [vmem:[%s218 + $0x270] sm:$0xff] %v1746
        %2023 = vst [vmem:[%s218 + $0x278] sm:$0xff] %v1749
        %2024 = vst [vmem:[%s218 + $0x280] sm:$0xff] %v1754
        %2025 = vst [vmem:[%s218 + $0x288] sm:$0xff] %v1757
        %2026 = vst [vmem:[%s218 + $0x290] sm:$0xff] %v1762
        %2027 = vst [vmem:[%s218 + $0x298] sm:$0xff] %v1765
        %2028 = vst [vmem:[%s218 + $0x2a0] sm:$0xff] %v1770
        %2029 = vst [vmem:[%s218 + $0x2a8] sm:$0xff] %v1773
        %2030 = vst [vmem:[%s218 + $0x2b0] sm:$0xff] %v1778
        %2031 = vst [vmem:[%s218 + $0x2b8] sm:$0xff] %v1781
        %2032 = vst [vmem:[%s218 + $0x2c0] sm:$0xff] %v1786
        %2033 = vst [vmem:[%s218 + $0x2c8] sm:$0xff] %v1789
        %2034 = vst [vmem:[%s218 + $0x2d0] sm:$0xff] %v1794
        %2035 = vst [vmem:[%s218 + $0x2d8] sm:$0xff] %v1797
        %2036 = vst [vmem:[%s218 + $0x2e0] sm:$0xff] %v1802
        %2037 = vst [vmem:[%s218 + $0x2e8] sm:$0xff] %v1805
        %2038 = vst [vmem:[%s218 + $0x2f0] sm:$0xff] %v1810
        %2039 = vst [vmem:[%s218 + $0x2f8] sm:$0xff] %v1813
        %2040 = vst [vmem:[%s218 + $0x300] sm:$0xff] %v1818
        %2041 = vst [vmem:[%s218 + $0x308] sm:$0xff] %v1821
        %2042 = vst [vmem:[%s218 + $0x310] sm:$0xff] %v1826
        %2043 = vst [vmem:[%s218 + $0x318] sm:$0xff] %v1829
        %2044 = vst [vmem:[%s218 + $0x320] sm:$0xff] %v1834
        %2045 = vst [vmem:[%s218 + $0x328] sm:$0xff] %v1837
        %2046 = vst [vmem:[%s218 + $0x330] sm:$0xff] %v1842
        %2047 = vst [vmem:[%s218 + $0x338] sm:$0xff] %v1845
        %2048 = vst [vmem:[%s218 + $0x340] sm:$0xff] %v1850
        %2049 = vst [vmem:[%s218 + $0x348] sm:$0xff] %v1853
        %2050 = vst [vmem:[%s218 + $0x350] sm:$0xff] %v1858
        %2051 = vst [vmem:[%s218 + $0x358] sm:$0xff] %v1861
        %2052 = vst [vmem:[%s218 + $0x360] sm:$0xff] %v1866
        %2053 = vst [vmem:[%s218 + $0x368] sm:$0xff] %v1869
        %2054 = vst [vmem:[%s218 + $0x370] sm:$0xff] %v1874
        %2055 = vst [vmem:[%s218 + $0x378] sm:$0xff] %v1877
        %2056 = vst [vmem:[%s218 + $0x380] sm:$0xff] %v1882
        %2057 = vst [vmem:[%s218 + $0x388] sm:$0xff] %v1885
        %2058 = vst [vmem:[%s218 + $0x390] sm:$0xff] %v1890
        %2059 = vst [vmem:[%s218 + $0x398] sm:$0xff] %v1893
        %2060 = vst [vmem:[%s218 + $0x3a0] sm:$0xff] %v1898
        %2061 = vst [vmem:[%s218 + $0x3a8] sm:$0xff] %v1901
        %2062 = vst [vmem:[%s218 + $0x3b0] sm:$0xff] %v1906
        %2063 = vst [vmem:[%s218 + $0x3b8] sm:$0xff] %v1909
        %2064 = vst [vmem:[%s218 + $0x3c0] sm:$0xff] %v1914
        %2065 = vst [vmem:[%s218 + $0x3c8] sm:$0xff] %v1917
        %2066 = vst [vmem:[%s218 + $0x3d0] sm:$0xff] %v1922
        %2067 = vst [vmem:[%s218 + $0x3d8] sm:$0xff] %v1925
        %2068 = vst [vmem:[%s218 + $0x3e0] sm:$0xff] %v1930
        %2069 = vst [vmem:[%s218 + $0x3e8] sm:$0xff] %v1933
        %2070 = vst [vmem:[%s218 + $0x3f0] sm:$0xff] %v1938
        %2071 = vst [vmem:[%s218 + $0x3f8] sm:$0xff] %v1941
        %s2072 = sand.u32 %s137, 1
        %s2073 = scalar_lea.sflag [#allocation3], %s2072
        %s2074 = sand.u32 %s137, 1
        %s2075 = smul.addr %s2074, 1024
        %s2076 = scalar_lea.vmem [#allocation2], %s2075
        // Predicated region
        $region41: #{tpu_custom_call.1} parent=39 // pred_check
          %p2077 = pneg %p147
        $region42: #{tpu_custom_call.1} parent=39 // pred_check_branch
          %2079 = sbr.rel (%p2077) target = $region44
        $region43: #{tpu_custom_call.1} parent=39 // pred_region
          %s2080 = smul.u32 128, %s19
          %s2082 = ssub.s32 16384, 16384
          %2083 = vsyncadd %s2073, %s2082
          %s2084 = smul.addr %s2080, 128
          %s2085 = scalar_lea.hbm %s5, %s2084
          %s2086 = sshll.u32 %s2076, 4
          %s2087 = int_to_ptr.vmem [resolvable:$true] %s2086
          %2092 = dma.vmem_to_hbm [thread:$0]  %s2087, 16384, %s2085, %s2073, 128, 128, 8
        $region44: #{tpu_custom_call.1} parent=39 // pred_fallthru
          _
      $region40: #{tpu_custom_call.1} parent=5 // pred_fallthru
        _
      %p2093 = scmp.le.s32.totalorder 2, %s14
      // Predicated region
      $region45: #{tpu_custom_call.1} parent=5 // pred_check
        %p2094 = pneg %p2093
      $region46: #{tpu_custom_call.1} parent=5 // pred_check_branch
        %2096 = sbr.rel (%p2094) target = $region48
      $region47: #{tpu_custom_call.1} parent=5 // pred_region
        %s2097 = ssub.s32 %s14, 2
        // Predicated region
        $region49: #{tpu_custom_call.1} parent=47 // pred_check
          %p2098 = pneg %p153
        $region50: #{tpu_custom_call.1} parent=47 // pred_check_branch
          %2100 = sbr.rel (%p2098) target = $region52
        $region51: #{tpu_custom_call.1} parent=47 // pred_region
          %s2101 = sand.u32 %s138, 1
          %s2102 = scalar_lea.sflag [#allocation3], %s2101
          %s2103 = sand.u32 %s138, 1
          %s2104 = smul.addr %s2103, 1024
          %s2105 = scalar_lea.vmem [#allocation2], %s2104
          %2106 = dma.done %s2102, 16384
        $region52: #{tpu_custom_call.1} parent=47 // pred_fallthru
          _
      $region48: #{tpu_custom_call.1} parent=5 // pred_fallthru
        _
    $region6: #{tpu_custom_call.1} parent=1 // loop_footer
      %s18 = sadd.s32 1, %s14
    $region7: #{tpu_custom_call.1} parent=1 // loop_footer_branch
      %13 = sbr.rel target = $region3
    $region8: #{tpu_custom_call.1} parent=1 // loop_exit
      _
    %2107 = vsyncpa [#allocation3], 1
    %s2108 = scalar_lea.sflag [#allocation3], 1
    %2109 = vsyncpa %s2108, 1

</llo_original>
